<compile_context>
chip_gen: v6e
topology: v6e:2x2x1
jax: 0.10.0
libtpu: 0.0.40
codegen_flags: <defaults>
</compile_context>

<pallas_src>
import math
import functools

import jax
import jax.numpy as jnp
from jax.experimental import pallas as pl
from jax.experimental.pallas import tpu as pltpu


def _mha_kernel(*refs, num_heads, head_dim, q_tile, seq_len, has_mask):
    if has_mask:
        (x_ref, wqkv_ref, bqkv_ref, wo_ref, bo_ref, mask_ref,
         o_ref, q_s, k_s, v_s, merged_s) = refs
    else:
        (x_ref, wqkv_ref, bqkv_ref, wo_ref, bo_ref,
         o_ref, q_s, k_s, v_s, merged_s) = refs
        mask_ref = None

    H, d = num_heads, head_dim
    E = H * d
    qi = pl.program_id(1)
    n_q_tiles = seq_len // q_tile

    # ---- per-batch init: one fused QKV projection into head-major scratch ----
    @pl.when(qi == 0)
    def _():
        x = x_ref[0]                                               # (S, E), compute dtype
        qkv = jnp.dot(x, wqkv_ref[...],
                      preferred_element_type=jnp.float32)          # (S, 3E) f32 acc
        qkv = qkv + bqkv_ref[...].astype(jnp.float32)              # bias add in f32
        qkv = qkv.astype(q_s.dtype)
        # Layout pass (init-only, once per batch element): split the fused
        # projection into head-major (H, S, d) slabs.  Stores bound live ranges.
        for h in range(H):
            q_s[h] = qkv[:, h * d:(h + 1) * d]
            k_s[h] = qkv[:, E + h * d:E + (h + 1) * d]
            v_s[h] = qkv[:, 2 * E + h * d:2 * E + (h + 1) * d]

    # ---- attention for this query tile, all heads batched ----
    if n_q_tiles == 1:
        q_t = q_s[...]                                             # (H, S, d)
    else:
        start = pl.multiple_of(qi * q_tile, q_tile)
        q_t = q_s[:, pl.ds(start, q_tile), :]                      # (H, tq, d)
    k = k_s[...]                                                   # (H, S, d)
    v = v_s[...]                                                   # (H, S, d)

    scale = 1.0 / math.sqrt(d)
    logits = jnp.einsum('hqd,hkd->hqk', q_t, k,
                        preferred_element_type=jnp.float32) * scale  # (H, tq, S) f32
    if has_mask:
        # Additive bias: 0 where attended, -1e30 where masked (== masked_fill -inf).
        logits = logits + mask_ref[...][None, :, :]

    # Numerically-stable softmax over keys, all in f32.
    logits = logits - jnp.max(logits, axis=-1, keepdims=True)
    p = jnp.exp(logits)
    p = p * pl.reciprocal(jnp.sum(p, axis=-1, keepdims=True), approx=True)

    ctx = jnp.einsum('hqk,hkd->hqd', p.astype(v.dtype), v,
                     preferred_element_type=jnp.float32)           # (H, tq, d) f32
    ctx = ctx.astype(merged_s.dtype)
    # Head merge: write each head's slab in place (no concatenate / relayout).
    for h in range(H):
        merged_s[:, h * d:(h + 1) * d] = ctx[h]

    out = jnp.dot(merged_s[...], wo_ref[...],
                  preferred_element_type=jnp.float32)              # (tq, E) f32
    out = out + bo_ref[...].astype(jnp.float32)
    o_ref[0] = out.astype(o_ref.dtype)


def _prepare_params(w_qkv, b_qkv, w_o, b_o, num_heads):
    """Rearrange the PyTorch fused qkv_proj parameters (3E,E)/(3E,) into a
    pre-transposed, head-major fused weight (E, 3E): columns [0,E) -> Q,
    [E,2E) -> K, [2E,3E) -> V, each head-major (head h owns cols h*d:(h+1)*d).
    This matches `qkv.reshape(B,S,H,3d).chunk(3, dim=-1)` of the reference
    module and removes every transpose from the kernel body."""
    E = w_o.shape[0]
    d = E // num_heads
    w = w_qkv.reshape(num_heads, 3, d, E)       # [head, {q,k,v}, d, in]
    b = b_qkv.reshape(num_heads, 3, d)
    w_fused = jnp.concatenate([w[:, c].reshape(E, E) for c in range(3)], axis=0)  # (3E, E)
    b_fused = jnp.concatenate([b[:, c].reshape(E) for c in range(3)], axis=0)     # (3E,)
    return (jnp.transpose(w_fused),             # (E, 3E):  y = x @ W
            b_fused.reshape(1, 3 * E),
            jnp.transpose(w_o),                 # (E, E):   y = h @ Wo
            b_o.reshape(1, E))


def _choose_q_tile(seq_len):
    for t in (256, 128):
        if seq_len % t == 0:
            return t
    return seq_len                               # small sequences: a single tile


def multi_head_attention(x, w_qkv, b_qkv, w_o, b_o, *, num_heads,
                         mask=None, q_tile=None):
    B, S, E = x.shape
    assert E % num_heads == 0
    d = E // num_heads
    cdt = x.dtype                                # compute / output dtype (bf16-friendly)

    wqkv_t, bqkv, wo_t, bo = _prepare_params(w_qkv, b_qkv, w_o, b_o, num_heads)
    wqkv_t = wqkv_t.astype(cdt)
    wo_t = wo_t.astype(cdt)
    bqkv = bqkv.astype(cdt)
    bo = bo.astype(cdt)

    if q_tile is None:
        q_tile = _choose_q_tile(S)
    assert S % q_tile == 0, "q_tile must divide the sequence length"
    nq = S // q_tile

    has_mask = mask is not None
    kernel = functools.partial(_mha_kernel, num_heads=num_heads, head_dim=d,
                               q_tile=q_tile, seq_len=S, has_mask=has_mask)

    const = lambda b, qi: (0, 0)
    in_specs = [
        pl.BlockSpec((1, S, E), lambda b, qi: (b, 0, 0)),   # x (full sequence per batch)
        pl.BlockSpec((E, 3 * E), const),                    # fused, pre-transposed W_qkv
        pl.BlockSpec((1, 3 * E), const),                    # fused bias
        pl.BlockSpec((E, E), const),                        # pre-transposed W_out
        pl.BlockSpec((1, E), const),                        # out-proj bias
    ]
    inputs = [x, wqkv_t, bqkv, wo_t, bo]
    if has_mask:
        mask_bias = jnp.where(mask[:S, :S] == 0,
                              jnp.float32(-1e30), jnp.float32(0.0))  # (S, S) f32
        in_specs.append(pl.BlockSpec((q_tile, S), lambda b, qi: (qi, 0)))
        inputs.append(mask_bias)

    # Explicit scoped-VMEM budget (weights + activations + scratch + f32 temps).
    itemsize = jnp.dtype(cdt).itemsize
    total = (2 * S * E * itemsize                            # x (double-buffered)
             + (4 * E * E + 4 * E) * itemsize                # weights + biases (resident)
             + 2 * q_tile * E * itemsize                     # output block (double-buffered)
             + (3 * num_heads * S * d + q_tile * E) * itemsize   # Q/K/V + merged scratch
             + 3 * num_heads * q_tile * S * 4                # f32 logits / probs temps
             + 3 * E * S * 4)                                # f32 fused-projection temp
    if has_mask:
        total += 2 * q_tile * S * 4
    vmem_limit = min(max(int(total * 1.4) + (8 << 20), 32 << 20), 64 << 20)

    return pl.pallas_call(
        kernel,
        out_shape=jax.ShapeDtypeStruct((B, S, E), cdt),
        grid_spec=pltpu.PrefetchScalarGridSpec(
            num_scalar_prefetch=0,
            grid=(B, nq),
            in_specs=in_specs,
            out_specs=pl.BlockSpec((1, q_tile, E), lambda b, qi: (b, qi, 0)),
            scratch_shapes=[
                pltpu.VMEM((num_heads, S, d), cdt),   # Q, head-major (persists per batch)
                pltpu.VMEM((num_heads, S, d), cdt),   # K
                pltpu.VMEM((num_heads, S, d), cdt),   # V
                pltpu.VMEM((q_tile, E), cdt),         # merged-heads slab
            ],
        ),
        compiler_params=pltpu.CompilerParams(
            dimension_semantics=("parallel", "arbitrary"),
            vmem_limit_bytes=vmem_limit,
        ),
    )(*inputs)


def _reference_mha(x, w_qkv, b_qkv, w_o, b_o, num_heads, mask=None):
    """Plain-JAX reference mirroring the PyTorch forward exactly."""
    B, S, E = x.shape
    d = E // num_heads
    qkv = x @ w_qkv.T + b_qkv                              # (B, S, 3E)
    qkv = qkv.reshape(B, S, num_heads, 3 * d)
    q, k, v = jnp.split(qkv, 3, axis=-1)                   # each (B, S, H, d)
    attn = jnp.einsum('bqnd,bknd->bnqk', q, k) / math.sqrt(d)
    if mask is not None:
        attn = jnp.where(mask[:S, :S] == 0, -jnp.inf, attn)
    attn = jax.nn.softmax(attn, axis=-1)
    out = jnp.einsum('bnqk,bknd->bqnd', attn, v).reshape(B, S, E)
    return out @ w_o.T + b_o


if __name__ == "__main__":
    B, S, E, H = 2, 8, 32, 4

    key = jax.random.PRNGKey(0)
    kx, kw1, kb1, kw2, kb2 = jax.random.split(key, 5)

    x = jax.random.normal(kx, (B, S, E), dtype=jnp.float32)

    # Deterministic parameter init (PyTorch Linear-style uniform bounds).
    bound = 1.0 / math.sqrt(E)
    w_qkv = jax.random.uniform(kw1, (3 * E, E), jnp.float32, -bound, bound)
    b_qkv = jax.random.uniform(kb1, (3 * E,), jnp.float32, -bound, bound)
    w_o = jax.random.uniform(kw2, (E, E), jnp.float32, -bound, bound)
    b_o = jax.random.uniform(kb2, (E,), jnp.float32, -bound, bound)

    ref = _reference_mha(x, w_qkv, b_qkv, w_o, b_o, H)

    # 1) mask=None path, f32.
    out = jax.block_until_ready(
        multi_head_attention(x, w_qkv, b_qkv, w_o, b_o, num_heads=H))
    assert out.shape == (B, S, E) and out.dtype == x.dtype
    assert jnp.allclose(out, ref, atol=2e-3, rtol=2e-3), "f32 mismatch vs reference"

    # 2) causal-mask path.
    mask = jnp.tril(jnp.ones((S, S), jnp.int32))
    out_m = jax.block_until_ready(
        multi_head_attention(x, w_qkv, b_qkv, w_o, b_o, num_heads=H, mask=mask))
    ref_m = _reference_mha(x, w_qkv, b_qkv, w_o, b_o, H, mask=mask)
    assert jnp.allclose(out_m, ref_m, atol=2e-3, rtol=2e-3), "masked mismatch vs reference"

    # 3) bf16 path (MXU-friendly operands, f32 softmax, bf16 output).
    out_bf = jax.block_until_ready(
        multi_head_attention(x.astype(jnp.bfloat16), w_qkv, b_qkv, w_o, b_o,
                             num_heads=H))
    assert out_bf.dtype == jnp.bfloat16
    assert jnp.allclose(out_bf.astype(jnp.float32), ref, atol=1e-1, rtol=1e-1), \
        "bf16 mismatch vs reference"

    print("KERNEL_OK")
</pallas_src>

<mosaic_0001>
module attributes {stable_mosaic.version = 11 : i64} {
  func.func @_mha_kernel(%arg0: i32, %arg1: i32, %arg2: memref<1x8x32xf32, #tpu.memory_space<vmem>>, %arg3: memref<32x96xf32, #tpu.memory_space<vmem>>, %arg4: memref<1x96xf32, #tpu.memory_space<vmem>>, %arg5: memref<32x32xf32, #tpu.memory_space<vmem>>, %arg6: memref<1x32xf32, #tpu.memory_space<vmem>>, %arg7: memref<1x8x32xf32, #tpu.memory_space<vmem>>, %arg8: memref<4x8x8xf32, #tpu.memory_space<vmem>>, %arg9: memref<4x8x8xf32, #tpu.memory_space<vmem>>, %arg10: memref<4x8x8xf32, #tpu.memory_space<vmem>>, %arg11: memref<8x32xf32, #tpu.memory_space<vmem>>) attributes {dimension_semantics = [#tpu.dimension_semantics<parallel>, #tpu.dimension_semantics<arbitrary>], iteration_bounds = array<i64: 2, 1>, scalar_prefetch = 0 : i64, scratch_operands = 4 : i64, tpu.core_type = #tpu.core_type<tc>, window_params = [{transform_indices = @transform_0, window_bounds = array<i64: 1, 8, 32>}, {pipeline_mode = #tpu.pipeline_mode<synchronous>, transform_indices = @transform_1, window_bounds = array<i64: 32, 96>}, {pipeline_mode = #tpu.pipeline_mode<synchronous>, transform_indices = @transform_2, window_bounds = array<i64: 1, 96>}, {pipeline_mode = #tpu.pipeline_mode<synchronous>, transform_indices = @transform_3, window_bounds = array<i64: 32, 32>}, {pipeline_mode = #tpu.pipeline_mode<synchronous>, transform_indices = @transform_4, window_bounds = array<i64: 1, 32>}, {transform_indices = @transform_5, window_bounds = array<i64: 1, 8, 32>}]} {
    %c0_i32 = arith.constant 0 : i32
    %0 = arith.cmpi eq, %arg1, %c0_i32 : i32
    %1 = arith.extui %0 : i1 to i32
    %c0_i32_0 = arith.constant 0 : i32
    %2 = arith.cmpi ne, %1, %c0_i32_0 : i32
    scf.if %2 {
      %c0_28 = arith.constant 0 : index
      %c0_29 = arith.constant 0 : index
      %c0_30 = arith.constant 0 : index
      %41 = vector.load %arg2[%c0_28, %c0_29, %c0_30] : memref<1x8x32xf32, #tpu.memory_space<vmem>>, vector<1x8x32xf32>
      %42 = vector.shape_cast %41 : vector<1x8x32xf32> to vector<8x32xf32>
      %c0_31 = arith.constant 0 : index
      %c0_32 = arith.constant 0 : index
      %43 = vector.load %arg3[%c0_31, %c0_32] : memref<32x96xf32, #tpu.memory_space<vmem>>, vector<32x96xf32>
      %cst_33 = arith.constant dense<0.000000e+00> : vector<8x96xf32>
      %44 = tpu.matmul %42, %43, %cst_33 {dimension_numbers = #tpu.dot_dimension_numbers<[1], [0], [0], [1], [0, 0, 1, 1], [], []>} : vector<8x32xf32>, vector<32x96xf32>, vector<8x96xf32> -> vector<8x96xf32>
      %c0_34 = arith.constant 0 : index
      %c0_35 = arith.constant 0 : index
      %45 = vector.load %arg4[%c0_34, %c0_35] : memref<1x96xf32, #tpu.memory_space<vmem>>, vector<1x96xf32>
      %46 = vector.broadcast %45 : vector<1x96xf32> to vector<8x96xf32>
      %47 = arith.addf %44, %46 : vector<8x96xf32>
      %48 = vector.extract_strided_slice %47 {offsets = [0, 0], sizes = [8, 8], strides = [1, 1]} : vector<8x96xf32> to vector<8x8xf32>
      %c0_36 = arith.constant 0 : index
      %c0_37 = arith.constant 0 : index
      %c0_38 = arith.constant 0 : index
      %49 = vector.load %arg8[%c0_36, %c0_37, %c0_38] : memref<4x8x8xf32, #tpu.memory_space<vmem>>, vector<1x8x8xf32>
      %50 = vector.shape_cast %49 : vector<1x8x8xf32> to vector<8x8xf32>
      %51 = vector.shape_cast %48 : vector<8x8xf32> to vector<1x8x8xf32>
      tpu.vector_store %arg8[%c0_36, %c0_37, %c0_38], %51 {strides = array<i32>} : memref<4x8x8xf32, #tpu.memory_space<vmem>>, vector<1x8x8xf32>,
      %52 = vector.extract_strided_slice %47 {offsets = [0, 32], sizes = [8, 8], strides = [1, 1]} : vector<8x96xf32> to vector<8x8xf32>
      %c0_39 = arith.constant 0 : index
      %c0_40 = arith.constant 0 : index
      %c0_41 = arith.constant 0 : index
      %53 = vector.load %arg9[%c0_39, %c0_40, %c0_41] : memref<4x8x8xf32, #tpu.memory_space<vmem>>, vector<1x8x8xf32>
      %54 = vector.shape_cast %53 : vector<1x8x8xf32> to vector<8x8xf32>
      %55 = vector.shape_cast %52 : vector<8x8xf32> to vector<1x8x8xf32>
      tpu.vector_store %arg9[%c0_39, %c0_40, %c0_41], %55 {strides = array<i32>} : memref<4x8x8xf32, #tpu.memory_space<vmem>>, vector<1x8x8xf32>,
      %56 = vector.extract_strided_slice %47 {offsets = [0, 64], sizes = [8, 8], strides = [1, 1]} : vector<8x96xf32> to vector<8x8xf32>
      %c0_42 = arith.constant 0 : index
      %c0_43 = arith.constant 0 : index
      %c0_44 = arith.constant 0 : index
      %57 = vector.load %arg10[%c0_42, %c0_43, %c0_44] : memref<4x8x8xf32, #tpu.memory_space<vmem>>, vector<1x8x8xf32>
      %58 = vector.shape_cast %57 : vector<1x8x8xf32> to vector<8x8xf32>
      %59 = vector.shape_cast %56 : vector<8x8xf32> to vector<1x8x8xf32>
      tpu.vector_store %arg10[%c0_42, %c0_43, %c0_44], %59 {strides = array<i32>} : memref<4x8x8xf32, #tpu.memory_space<vmem>>, vector<1x8x8xf32>,
      %60 = vector.extract_strided_slice %47 {offsets = [0, 8], sizes = [8, 8], strides = [1, 1]} : vector<8x96xf32> to vector<8x8xf32>
      %c1 = arith.constant 1 : index
      %c0_45 = arith.constant 0 : index
      %c0_46 = arith.constant 0 : index
      %61 = vector.load %arg8[%c1, %c0_45, %c0_46] : memref<4x8x8xf32, #tpu.memory_space<vmem>>, vector<1x8x8xf32>
      %62 = vector.shape_cast %61 : vector<1x8x8xf32> to vector<8x8xf32>
      %63 = vector.shape_cast %60 : vector<8x8xf32> to vector<1x8x8xf32>
      tpu.vector_store %arg8[%c1, %c0_45, %c0_46], %63 {strides = array<i32>} : memref<4x8x8xf32, #tpu.memory_space<vmem>>, vector<1x8x8xf32>,
      %64 = vector.extract_strided_slice %47 {offsets = [0, 40], sizes = [8, 8], strides = [1, 1]} : vector<8x96xf32> to vector<8x8xf32>
      %c1_47 = arith.constant 1 : index
      %c0_48 = arith.constant 0 : index
      %c0_49 = arith.constant 0 : index
      %65 = vector.load %arg9[%c1_47, %c0_48, %c0_49] : memref<4x8x8xf32, #tpu.memory_space<vmem>>, vector<1x8x8xf32>
      %66 = vector.shape_cast %65 : vector<1x8x8xf32> to vector<8x8xf32>
      %67 = vector.shape_cast %64 : vector<8x8xf32> to vector<1x8x8xf32>
      tpu.vector_store %arg9[%c1_47, %c0_48, %c0_49], %67 {strides = array<i32>} : memref<4x8x8xf32, #tpu.memory_space<vmem>>, vector<1x8x8xf32>,
      %68 = vector.extract_strided_slice %47 {offsets = [0, 72], sizes = [8, 8], strides = [1, 1]} : vector<8x96xf32> to vector<8x8xf32>
      %c1_50 = arith.constant 1 : index
      %c0_51 = arith.constant 0 : index
      %c0_52 = arith.constant 0 : index
      %69 = vector.load %arg10[%c1_50, %c0_51, %c0_52] : memref<4x8x8xf32, #tpu.memory_space<vmem>>, vector<1x8x8xf32>
      %70 = vector.shape_cast %69 : vector<1x8x8xf32> to vector<8x8xf32>
      %71 = vector.shape_cast %68 : vector<8x8xf32> to vector<1x8x8xf32>
      tpu.vector_store %arg10[%c1_50, %c0_51, %c0_52], %71 {strides = array<i32>} : memref<4x8x8xf32, #tpu.memory_space<vmem>>, vector<1x8x8xf32>,
      %72 = vector.extract_strided_slice %47 {offsets = [0, 16], sizes = [8, 8], strides = [1, 1]} : vector<8x96xf32> to vector<8x8xf32>
      %c2 = arith.constant 2 : index
      %c0_53 = arith.constant 0 : index
      %c0_54 = arith.constant 0 : index
      %73 = vector.load %arg8[%c2, %c0_53, %c0_54] : memref<4x8x8xf32, #tpu.memory_space<vmem>>, vector<1x8x8xf32>
      %74 = vector.shape_cast %73 : vector<1x8x8xf32> to vector<8x8xf32>
      %75 = vector.shape_cast %72 : vector<8x8xf32> to vector<1x8x8xf32>
      tpu.vector_store %arg8[%c2, %c0_53, %c0_54], %75 {strides = array<i32>} : memref<4x8x8xf32, #tpu.memory_space<vmem>>, vector<1x8x8xf32>,
      %76 = vector.extract_strided_slice %47 {offsets = [0, 48], sizes = [8, 8], strides = [1, 1]} : vector<8x96xf32> to vector<8x8xf32>
      %c2_55 = arith.constant 2 : index
      %c0_56 = arith.constant 0 : index
      %c0_57 = arith.constant 0 : index
      %77 = vector.load %arg9[%c2_55, %c0_56, %c0_57] : memref<4x8x8xf32, #tpu.memory_space<vmem>>, vector<1x8x8xf32>
      %78 = vector.shape_cast %77 : vector<1x8x8xf32> to vector<8x8xf32>
      %79 = vector.shape_cast %76 : vector<8x8xf32> to vector<1x8x8xf32>
      tpu.vector_store %arg9[%c2_55, %c0_56, %c0_57], %79 {strides = array<i32>} : memref<4x8x8xf32, #tpu.memory_space<vmem>>, vector<1x8x8xf32>,
      %80 = vector.extract_strided_slice %47 {offsets = [0, 80], sizes = [8, 8], strides = [1, 1]} : vector<8x96xf32> to vector<8x8xf32>
      %c2_58 = arith.constant 2 : index
      %c0_59 = arith.constant 0 : index
      %c0_60 = arith.constant 0 : index
      %81 = vector.load %arg10[%c2_58, %c0_59, %c0_60] : memref<4x8x8xf32, #tpu.memory_space<vmem>>, vector<1x8x8xf32>
      %82 = vector.shape_cast %81 : vector<1x8x8xf32> to vector<8x8xf32>
      %83 = vector.shape_cast %80 : vector<8x8xf32> to vector<1x8x8xf32>
      tpu.vector_store %arg10[%c2_58, %c0_59, %c0_60], %83 {strides = array<i32>} : memref<4x8x8xf32, #tpu.memory_space<vmem>>, vector<1x8x8xf32>,
      %84 = vector.extract_strided_slice %47 {offsets = [0, 24], sizes = [8, 8], strides = [1, 1]} : vector<8x96xf32> to vector<8x8xf32>
      %c3 = arith.constant 3 : index
      %c0_61 = arith.constant 0 : index
      %c0_62 = arith.constant 0 : index
      %85 = vector.load %arg8[%c3, %c0_61, %c0_62] : memref<4x8x8xf32, #tpu.memory_space<vmem>>, vector<1x8x8xf32>
      %86 = vector.shape_cast %85 : vector<1x8x8xf32> to vector<8x8xf32>
      %87 = vector.shape_cast %84 : vector<8x8xf32> to vector<1x8x8xf32>
      tpu.vector_store %arg8[%c3, %c0_61, %c0_62], %87 {strides = array<i32>} : memref<4x8x8xf32, #tpu.memory_space<vmem>>, vector<1x8x8xf32>,
      %88 = vector.extract_strided_slice %47 {offsets = [0, 56], sizes = [8, 8], strides = [1, 1]} : vector<8x96xf32> to vector<8x8xf32>
      %c3_63 = arith.constant 3 : index
      %c0_64 = arith.constant 0 : index
      %c0_65 = arith.constant 0 : index
      %89 = vector.load %arg9[%c3_63, %c0_64, %c0_65] : memref<4x8x8xf32, #tpu.memory_space<vmem>>, vector<1x8x8xf32>
      %90 = vector.shape_cast %89 : vector<1x8x8xf32> to vector<8x8xf32>
      %91 = vector.shape_cast %88 : vector<8x8xf32> to vector<1x8x8xf32>
      tpu.vector_store %arg9[%c3_63, %c0_64, %c0_65], %91 {strides = array<i32>} : memref<4x8x8xf32, #tpu.memory_space<vmem>>, vector<1x8x8xf32>,
      %92 = vector.extract_strided_slice %47 {offsets = [0, 88], sizes = [8, 8], strides = [1, 1]} : vector<8x96xf32> to vector<8x8xf32>
      %c3_66 = arith.constant 3 : index
      %c0_67 = arith.constant 0 : index
      %c0_68 = arith.constant 0 : index
      %93 = vector.load %arg10[%c3_66, %c0_67, %c0_68] : memref<4x8x8xf32, #tpu.memory_space<vmem>>, vector<1x8x8xf32>
      %94 = vector.shape_cast %93 : vector<1x8x8xf32> to vector<8x8xf32>
      %95 = vector.shape_cast %92 : vector<8x8xf32> to vector<1x8x8xf32>
      tpu.vector_store %arg10[%c3_66, %c0_67, %c0_68], %95 {strides = array<i32>} : memref<4x8x8xf32, #tpu.memory_space<vmem>>, vector<1x8x8xf32>,
    } else {
    }
    %c0 = arith.constant 0 : index
    %c0_1 = arith.constant 0 : index
    %c0_2 = arith.constant 0 : index
    %3 = vector.load %arg8[%c0, %c0_1, %c0_2] : memref<4x8x8xf32, #tpu.memory_space<vmem>>, vector<4x8x8xf32>
    %c0_3 = arith.constant 0 : index
    %c0_4 = arith.constant 0 : index
    %c0_5 = arith.constant 0 : index
    %4 = vector.load %arg9[%c0_3, %c0_4, %c0_5] : memref<4x8x8xf32, #tpu.memory_space<vmem>>, vector<4x8x8xf32>
    %c0_6 = arith.constant 0 : index
    %c0_7 = arith.constant 0 : index
    %c0_8 = arith.constant 0 : index
    %5 = vector.load %arg10[%c0_6, %c0_7, %c0_8] : memref<4x8x8xf32, #tpu.memory_space<vmem>>, vector<4x8x8xf32>
    "tpu.trace_start"() <{level = 10 : i32, message = "hqd,hkd->hqk"}> : () -> ()
    %cst = arith.constant dense<0.000000e+00> : vector<4x8x8xf32>
    %6 = tpu.matmul %3, %4, %cst {dimension_numbers = #tpu.dot_dimension_numbers<[2], [2], [1], [1], [0, 0, 0, 1, 1, 1], [0], [0]>} : vector<4x8x8xf32>, vector<4x8x8xf32>, vector<4x8x8xf32> -> vector<4x8x8xf32>
    "tpu.trace_stop"() : () -> ()
    %cst_9 = arith.constant 0.353553385 : f32
    %7 = vector.broadcast %cst_9 : f32 to vector<4x8x8xf32>
    %8 = arith.mulf %6, %7 : vector<4x8x8xf32>
    %cst_10 = arith.constant dense<0xFF800000> : vector<4x8xf32>
    %9 = vector.multi_reduction <maximumf>, %8, %cst_10 [2] : vector<4x8x8xf32> to vector<4x8xf32>
    %10 = vector.shape_cast %9 : vector<4x8xf32> to vector<4x8x1xf32>
    %11 = vector.broadcast %10 : vector<4x8x1xf32> to vector<4x8x8xf32>
    %12 = arith.subf %8, %11 : vector<4x8x8xf32>
    %13 = math.exp %12 : vector<4x8x8xf32>
    %cst_11 = arith.constant dense<0.000000e+00> : vector<4x8xf32>
    %14 = vector.multi_reduction <add>, %13, %cst_11 [2] : vector<4x8x8xf32> to vector<4x8xf32>
    %15 = vector.shape_cast %14 : vector<4x8xf32> to vector<4x8x1xf32>
    %16 = tpu.reciprocal %15 {approx = true} : vector<4x8x1xf32> -> vector<4x8x1xf32>
    %17 = vector.broadcast %16 : vector<4x8x1xf32> to vector<4x8x8xf32>
    %18 = arith.mulf %13, %17 : vector<4x8x8xf32>
    "tpu.trace_start"() <{level = 10 : i32, message = "hqk,hkd->hqd"}> : () -> ()
    %cst_12 = arith.constant dense<0.000000e+00> : vector<4x8x8xf32>
    %19 = tpu.matmul %18, %5, %cst_12 {dimension_numbers = #tpu.dot_dimension_numbers<[2], [1], [1], [2], [0, 0, 0, 1, 1, 2], [0], [0]>} : vector<4x8x8xf32>, vector<4x8x8xf32>, vector<4x8x8xf32> -> vector<4x8x8xf32>
    "tpu.trace_stop"() : () -> ()
    %20 = vector.extract_strided_slice %19 {offsets = [0, 0, 0], sizes = [1, 8, 8], strides = [1, 1, 1]} : vector<4x8x8xf32> to vector<1x8x8xf32>
    %21 = vector.shape_cast %20 : vector<1x8x8xf32> to vector<8x8xf32>
    %c0_13 = arith.constant 0 : index
    %c0_14 = arith.constant 0 : index
    %22 = vector.load %arg11[%c0_13, %c0_14] : memref<8x32xf32, #tpu.memory_space<vmem>>, vector<8x8xf32>
    tpu.vector_store %arg11[%c0_13, %c0_14], %21 {strides = array<i32>} : memref<8x32xf32, #tpu.memory_space<vmem>>, vector<8x8xf32>,
    %23 = vector.extract_strided_slice %19 {offsets = [1, 0, 0], sizes = [1, 8, 8], strides = [1, 1, 1]} : vector<4x8x8xf32> to vector<1x8x8xf32>
    %24 = vector.shape_cast %23 : vector<1x8x8xf32> to vector<8x8xf32>
    %c0_15 = arith.constant 0 : index
    %c8 = arith.constant 8 : index
    %25 = vector.load %arg11[%c0_15, %c8] : memref<8x32xf32, #tpu.memory_space<vmem>>, vector<8x8xf32>
    tpu.vector_store %arg11[%c0_15, %c8], %24 {strides = array<i32>} : memref<8x32xf32, #tpu.memory_space<vmem>>, vector<8x8xf32>,
    %26 = vector.extract_strided_slice %19 {offsets = [2, 0, 0], sizes = [1, 8, 8], strides = [1, 1, 1]} : vector<4x8x8xf32> to vector<1x8x8xf32>
    %27 = vector.shape_cast %26 : vector<1x8x8xf32> to vector<8x8xf32>
    %c0_16 = arith.constant 0 : index
    %c16 = arith.constant 16 : index
    %28 = vector.load %arg11[%c0_16, %c16] : memref<8x32xf32, #tpu.memory_space<vmem>>, vector<8x8xf32>
    tpu.vector_store %arg11[%c0_16, %c16], %27 {strides = array<i32>} : memref<8x32xf32, #tpu.memory_space<vmem>>, vector<8x8xf32>,
    %29 = vector.extract_strided_slice %19 {offsets = [3, 0, 0], sizes = [1, 8, 8], strides = [1, 1, 1]} : vector<4x8x8xf32> to vector<1x8x8xf32>
    %30 = vector.shape_cast %29 : vector<1x8x8xf32> to vector<8x8xf32>
    %c0_17 = arith.constant 0 : index
    %c24 = arith.constant 24 : index
    %31 = vector.load %arg11[%c0_17, %c24] : memref<8x32xf32, #tpu.memory_space<vmem>>, vector<8x8xf32>
    tpu.vector_store %arg11[%c0_17, %c24], %30 {strides = array<i32>} : memref<8x32xf32, #tpu.memory_space<vmem>>, vector<8x8xf32>,
    %c0_18 = arith.constant 0 : index
    %c0_19 = arith.constant 0 : index
    %32 = vector.load %arg11[%c0_18, %c0_19] : memref<8x32xf32, #tpu.memory_space<vmem>>, vector<8x32xf32>
    %c0_20 = arith.constant 0 : index
    %c0_21 = arith.constant 0 : index
    %33 = vector.load %arg5[%c0_20, %c0_21] : memref<32x32xf32, #tpu.memory_space<vmem>>, vector<32x32xf32>
    %cst_22 = arith.constant dense<0.000000e+00> : vector<8x32xf32>
    %34 = tpu.matmul %32, %33, %cst_22 {dimension_numbers = #tpu.dot_dimension_numbers<[1], [0], [0], [1], [0, 0, 1, 1], [], []>} : vector<8x32xf32>, vector<32x32xf32>, vector<8x32xf32> -> vector<8x32xf32>
    %c0_23 = arith.constant 0 : index
    %c0_24 = arith.constant 0 : index
    %35 = vector.load %arg6[%c0_23, %c0_24] : memref<1x32xf32, #tpu.memory_space<vmem>>, vector<1x32xf32>
    %36 = vector.broadcast %35 : vector<1x32xf32> to vector<8x32xf32>
    %37 = arith.addf %34, %36 : vector<8x32xf32>
    %c0_25 = arith.constant 0 : index
    %c0_26 = arith.constant 0 : index
    %c0_27 = arith.constant 0 : index
    %38 = vector.load %arg7[%c0_25, %c0_26, %c0_27] : memref<1x8x32xf32, #tpu.memory_space<vmem>>, vector<1x8x32xf32>
    %39 = vector.shape_cast %38 : vector<1x8x32xf32> to vector<8x32xf32>
    %40 = vector.shape_cast %37 : vector<8x32xf32> to vector<1x8x32xf32>
    tpu.vector_store %arg7[%c0_25, %c0_26, %c0_27], %40 {strides = array<i32>} : memref<1x8x32xf32, #tpu.memory_space<vmem>>, vector<1x8x32xf32>,
    return
  }
  func.func @transform_0(%arg0: i32, %arg1: i32) -> (i32, i32, i32) {
    %c0_i32 = arith.constant 0 : i32
    %c0_i32_0 = arith.constant 0 : i32
    %c0_i32_1 = arith.constant 0 : i32
    return %arg0, %c0_i32, %c0_i32_0 : i32, i32, i32
  }
  func.func @transform_1(%arg0: i32, %arg1: i32) -> (i32, i32) {
    %c0_i32 = arith.constant 0 : i32
    %c0_i32_0 = arith.constant 0 : i32
    %c0_i32_1 = arith.constant 0 : i32
    return %c0_i32, %c0_i32_0 : i32, i32
  }
  func.func @transform_2(%arg0: i32, %arg1: i32) -> (i32, i32) {
    %c0_i32 = arith.constant 0 : i32
    %c0_i32_0 = arith.constant 0 : i32
    %c0_i32_1 = arith.constant 0 : i32
    return %c0_i32, %c0_i32_0 : i32, i32
  }
  func.func @transform_3(%arg0: i32, %arg1: i32) -> (i32, i32) {
    %c0_i32 = arith.constant 0 : i32
    %c0_i32_0 = arith.constant 0 : i32
    %c0_i32_1 = arith.constant 0 : i32
    return %c0_i32, %c0_i32_0 : i32, i32
  }
  func.func @transform_4(%arg0: i32, %arg1: i32) -> (i32, i32) {
    %c0_i32 = arith.constant 0 : i32
    %c0_i32_0 = arith.constant 0 : i32
    %c0_i32_1 = arith.constant 0 : i32
    return %c0_i32, %c0_i32_0 : i32, i32
  }
  func.func @transform_5(%arg0: i32, %arg1: i32) -> (i32, i32, i32) {
    %c0_i32 = arith.constant 0 : i32
    %c0_i32_0 = arith.constant 0 : i32
    return %arg0, %arg1, %c0_i32 : i32, i32, i32
  }
}

</mosaic_0001>

<llo_original>
// kernel: tpu_custom_call.1
$region0: #{tpu_custom_call.1}
  #allocation0 [shape = 'u32[]', space=smem, size = 0x4, offset = 0x4, fixed_abs, tag = 'smem constant byte address 0x4 - core index']
  #allocation1 [shape = 'u32[144,128]{1,0:T(1,128)}', space=vmem, size = 0x12000, scoped, tag = 'internal scratch']
  #allocation2 [shape = 'f32[4,8,8]{2,1,0:T(8,128)}', space=vmem, size = 0x4000, scoped, tag = 'scratch operand']
  #allocation3 [shape = 'f32[4,8,8]{2,1,0:T(8,128)}', space=vmem, size = 0x4000, scoped, tag = 'scratch operand']
  #allocation4 [shape = 'f32[4,8,8]{2,1,0:T(8,128)}', space=vmem, size = 0x4000, scoped, tag = 'scratch operand']
  #allocation5 [shape = 'f32[8,32]{1,0:T(8,128)}', space=vmem, size = 0x1000, scoped, tag = 'scratch operand']
  %s0 = inlined_call_operand.hbm [shape: f32[2,8,32], index: 0, kind: input, shape index: {}]
  %s1 = inlined_call_operand.hbm [shape: f32[32,96], index: 1, kind: input, shape index: {}]
  %s2 = inlined_call_operand.vmem [shape: f32[1,96], index: 2, kind: input, shape index: {}]
  %s3 = inlined_call_operand.hbm [shape: f32[32,32], index: 3, kind: input, shape index: {}]
  %s4 = inlined_call_operand.vmem [shape: f32[1,32], index: 4, kind: input, shape index: {}]
  %s5 = inlined_call_operand.hbm [shape: f32[2,8,32], index: 5, kind: output, shape index: {}]
  %s6 = sld [smem:[#allocation0]]
  $region69: #{tpu_custom_call.1} parent=0
    _
  %s8 = ssub.s32 1, %s6
  %s9 = scalar_select 0, %s8, %s6
  $region1: #{tpu_custom_call.1} parent=0
    #allocation6 [shape = 'u8[8192]{0}', space=vmem, size = 0x2000, scoped, tag = 'input window, operand 0']
    #allocation7 [shape = 's32[2]{0}', space=sflag, size = 0x8, scoped, tag = 'scoped memory for tpu_custom_call.1']
    #allocation8 [shape = 's32[2]{0}', space=sflag, size = 0x8, scoped, tag = 'scoped memory for tpu_custom_call.1']
    #allocation9 [shape = 'u8[16384]{0}', space=vmem, size = 0x4000, scoped, tag = 'input window, operand 1, single buffered']
    #allocation10 [shape = 's32[1]{0}', space=sflag, size = 0x4, scoped, tag = 'scoped memory for tpu_custom_call.1']
    #allocation11 [shape = 'u8[16384]{0}', space=vmem, size = 0x4000, scoped, tag = 'input window, operand 3, single buffered']
    #allocation12 [shape = 'u8[8192]{0}', space=vmem, size = 0x2000, scoped, tag = 'output window, operand 0']
    %10 = vsyncpa [#allocation7], 0
    %s11 = scalar_lea.sflag [#allocation7], 1
    %12 = vsyncpa %s11, 0
    %13 = vsyncpa [#allocation10], 0
    %14 = vsyncpa [#allocation8], 0
    %s15 = scalar_lea.sflag [#allocation8], 1
    %16 = vsyncpa %s15, 0
    loop: start=0, step=1, limit=4
    $region2: #{tpu_custom_call.1} parent=1 // loop_pre_header
      _
    $region3: #{tpu_custom_call.1} parent=1 // loop_header
      %s18 = sphi 0, %s22
      %p19 = scmp.ge.s32.totalorder %s18, 4
      %s25 = sphi 0, %s37
      %s26 = sphi 0, %s33
      %s27 = sphi 0, %s25
      %s28 = sphi 0, %s26
      %s29 = sphi 0, %s27
      %s30 = sphi 0, %s28
      %s40 = sphi 0, %s42
      %s43 = sphi 0, %s40
      %s44 = sphi 0, %s43
      %s60 = sphi 0, %s44
      %s64 = sphi 0, %s64
      %s66 = sphi 0, %s64
      %s67 = sphi 0, %s66
      %s81 = sphi 0, %s67
      %s85 = sphi 0, %s85
      %s87 = sphi 0, %s85
      %s88 = sphi 0, %s87
      %s102 = sphi 0, %s88
      %s106 = sphi 0, %s106
      %s108 = sphi 0, %s106
      %s109 = sphi 0, %s108
      %s123 = sphi 0, %s109
      %s127 = sphi 0, %s127
      %s129 = sphi 0, %s127
      %s130 = sphi 0, %s129
      %s144 = sphi 0, %s130
      %s152 = sphi 0, %s154
      %s155 = sphi 0, %s152
      %s156 = sphi 0, %s155
      %s172 = sphi 0, %s156
    $region4: #{tpu_custom_call.1} parent=1 // loop_header_branch
      %21 = sbr.rel (%p19) target = $region8
    $region5: #{tpu_custom_call.1} parent=1 // loop_body
      %s23 = ssub.s32 %s18, 1
      %s24 = ssub.s32 %s18, 2
      %s31 = sadd.s32 1, %s26
      %p32 = scmp.ge.s32.totalorder %s31, 1
      %s33 = scalar_select %p32, 0, %s31
      %s34 = sadd.s32 1, %s25
      %s35 = scalar_select %p32, %s34, %s25
      %p36 = scmp.ge.s32.totalorder %s35, 2
      %s37 = scalar_select %p36, 0, %s35
      %s38 = ssub.s32 %s25, %s37
      %p39 = scmp.eq.s32.totalorder %s38, 0
      %s41 = sadd.s32 %s40, 1
      %s42 = scalar_select %p39, %s40, %s41
      %p45 = pneg %p39
      %p46 = scmp.eq.s32.totalorder %s18, 1
      %p47 = por %p45, %p46
      %p48 = scmp.ne.s32.totalorder %s40, %s43
      %p49 = scmp.eq.s32.totalorder %s18, 0
      %p50 = por %p48, %p49
      %p51 = scmp.ne.s32.totalorder %s40, %s43
      %p52 = scmp.eq.s32.totalorder %s23, 1
      %p53 = por %p51, %p52
      %p54 = scmp.ne.s32.totalorder %s43, %s44
      %p55 = scmp.eq.s32.totalorder %s23, 0
      %p56 = por %p54, %p55
      %p57 = scmp.ne.s32.totalorder %s43, %s44
      %p58 = scmp.eq.s32.totalorder %s24, 1
      %p59 = por %p57, %p58
      %p61 = scmp.ne.s32.totalorder %s44, %s60
      %p62 = scmp.eq.s32.totalorder %s24, 0
      %p63 = por %p61, %p62
      %s65 = sadd.s32 %s64, 1
      %p68 = scmp.eq.s32.totalorder %s18, 1
      %p69 = scmp.ne.s32.totalorder %s64, %s66
      %p70 = scmp.eq.s32.totalorder %s18, 0
      %p71 = por %p69, %p70
      %p72 = scmp.ne.s32.totalorder %s64, %s66
      %p73 = scmp.eq.s32.totalorder %s23, 1
      %p74 = por %p72, %p73
      %p75 = scmp.ne.s32.totalorder %s66, %s67
      %p76 = scmp.eq.s32.totalorder %s23, 0
      %p77 = por %p75, %p76
      %p78 = scmp.ne.s32.totalorder %s66, %s67
      %p79 = scmp.eq.s32.totalorder %s24, 1
      %p80 = por %p78, %p79
      %p82 = scmp.ne.s32.totalorder %s67, %s81
      %p83 = scmp.eq.s32.totalorder %s24, 0
      %p84 = por %p82, %p83
      %s86 = sadd.s32 %s85, 1
      %p89 = scmp.eq.s32.totalorder %s18, 1
      %p90 = scmp.ne.s32.totalorder %s85, %s87
      %p91 = scmp.eq.s32.totalorder %s18, 0
      %p92 = por %p90, %p91
      %p93 = scmp.ne.s32.totalorder %s85, %s87
      %p94 = scmp.eq.s32.totalorder %s23, 1
      %p95 = por %p93, %p94
      %p96 = scmp.ne.s32.totalorder %s87, %s88
      %p97 = scmp.eq.s32.totalorder %s23, 0
      %p98 = por %p96, %p97
      %p99 = scmp.ne.s32.totalorder %s87, %s88
      %p100 = scmp.eq.s32.totalorder %s24, 1
      %p101 = por %p99, %p100
      %p103 = scmp.ne.s32.totalorder %s88, %s102
      %p104 = scmp.eq.s32.totalorder %s24, 0
      %p105 = por %p103, %p104
      %s107 = sadd.s32 %s106, 1
      %p110 = scmp.eq.s32.totalorder %s18, 1
      %p111 = scmp.ne.s32.totalorder %s106, %s108
      %p112 = scmp.eq.s32.totalorder %s18, 0
      %p113 = por %p111, %p112
      %p114 = scmp.ne.s32.totalorder %s106, %s108
      %p115 = scmp.eq.s32.totalorder %s23, 1
      %p116 = por %p114, %p115
      %p117 = scmp.ne.s32.totalorder %s108, %s109
      %p118 = scmp.eq.s32.totalorder %s23, 0
      %p119 = por %p117, %p118
      %p120 = scmp.ne.s32.totalorder %s108, %s109
      %p121 = scmp.eq.s32.totalorder %s24, 1
      %p122 = por %p120, %p121
      %p124 = scmp.ne.s32.totalorder %s109, %s123
      %p125 = scmp.eq.s32.totalorder %s24, 0
      %p126 = por %p124, %p125
      %s128 = sadd.s32 %s127, 1
      %p131 = scmp.eq.s32.totalorder %s18, 1
      %p132 = scmp.ne.s32.totalorder %s127, %s129
      %p133 = scmp.eq.s32.totalorder %s18, 0
      %p134 = por %p132, %p133
      %p135 = scmp.ne.s32.totalorder %s127, %s129
      %p136 = scmp.eq.s32.totalorder %s23, 1
      %p137 = por %p135, %p136
      %p138 = scmp.ne.s32.totalorder %s129, %s130
      %p139 = scmp.eq.s32.totalorder %s23, 0
      %p140 = por %p138, %p139
      %p141 = scmp.ne.s32.totalorder %s129, %s130
      %p142 = scmp.eq.s32.totalorder %s24, 1
      %p143 = por %p141, %p142
      %p145 = scmp.ne.s32.totalorder %s130, %s144
      %p146 = scmp.eq.s32.totalorder %s24, 0
      %p147 = por %p145, %p146
      %s148 = ssub.s32 %s25, %s37
      %s149 = ssub.s32 %s26, %s33
      %s150 = sor.u32 %s148, %s149
      %p151 = scmp.eq.s32.totalorder %s150, 0
      %s153 = sadd.s32 %s152, 1
      %s154 = scalar_select %p151, %s152, %s153
      %p157 = pneg %p151
      %p158 = scmp.eq.s32.totalorder %s18, 1
      %p159 = por %p157, %p158
      %p160 = scmp.ne.s32.totalorder %s152, %s155
      %p161 = scmp.eq.s32.totalorder %s18, 0
      %p162 = por %p160, %p161
      %p163 = scmp.ne.s32.totalorder %s152, %s155
      %p164 = scmp.eq.s32.totalorder %s23, 1
      %p165 = por %p163, %p164
      %p166 = scmp.ne.s32.totalorder %s155, %s156
      %p167 = scmp.eq.s32.totalorder %s23, 0
      %p168 = por %p166, %p167
      %p169 = scmp.ne.s32.totalorder %s155, %s156
      %p170 = scmp.eq.s32.totalorder %s24, 1
      %p171 = por %p169, %p170
      %p173 = scmp.ne.s32.totalorder %s156, %s172
      %p174 = scmp.eq.s32.totalorder %s24, 0
      %p175 = por %p173, %p174
      %p176 = scmp.le.s32.totalorder 1, %s18
      %p177 = scmp.lt.s32.totalorder %s18, 3
      %p178 = pnand %p176, %p177
      %p179 = pneg %p178
      // Predicated region
      $region9: #{tpu_custom_call.1} parent=5 // pred_check
        _
      $region10: #{tpu_custom_call.1} parent=5 // pred_check_branch
        %181 = sbr.rel (%p178) target = $region12
      $region11: #{tpu_custom_call.1} parent=5 // pred_region
        %s182 = ssub.s32 %s18, 1
        // Predicated region
        $region13: #{tpu_custom_call.1} parent=11 // pred_check
          %p183 = pneg %p77
        $region14: #{tpu_custom_call.1} parent=11 // pred_check_branch
          %185 = sbr.rel (%p183) target = $region16
        $region15: #{tpu_custom_call.1} parent=11 // pred_region
          %s187 = ssub.s32 512, 512
          %188 = vsyncadd [#allocation10], %s187
          %s189 = sshll.u32 [#allocation9], 4
          %s190 = int_to_ptr.vmem [resolvable:$true] %s189
          %195 = dma.hbm_to_vmem [thread:$0]  %s1, 512, %s190, [#allocation10], 128, 128, 8
        $region16: #{tpu_custom_call.1} parent=11 // pred_fallthru
          _
        // Predicated region
        $region17: #{tpu_custom_call.1} parent=11 // pred_check
          %p196 = pneg %p98
        $region18: #{tpu_custom_call.1} parent=11 // pred_check_branch
          %198 = sbr.rel (%p196) target = $region20
        $region19: #{tpu_custom_call.1} parent=11 // pred_region
          _
        $region20: #{tpu_custom_call.1} parent=11 // pred_fallthru
          _
        // Predicated region
        $region21: #{tpu_custom_call.1} parent=11 // pred_check
          %p199 = pneg %p119
        $region22: #{tpu_custom_call.1} parent=11 // pred_check_branch
          %201 = sbr.rel (%p199) target = $region24
        $region23: #{tpu_custom_call.1} parent=11 // pred_region
          %s203 = ssub.s32 512, 512
          %204 = vsyncadd [#allocation10], %s203
          %s205 = sshll.u32 [#allocation11], 4
          %s206 = int_to_ptr.vmem [resolvable:$true] %s205
          %211 = dma.hbm_to_vmem [thread:$0]  %s3, 512, %s206, [#allocation10], 128, 128, 8
        $region24: #{tpu_custom_call.1} parent=11 // pred_fallthru
          _
        // Predicated region
        $region25: #{tpu_custom_call.1} parent=11 // pred_check
          %p212 = pneg %p140
        $region26: #{tpu_custom_call.1} parent=11 // pred_check_branch
          %214 = sbr.rel (%p212) target = $region28
        $region27: #{tpu_custom_call.1} parent=11 // pred_region
          _
        $region28: #{tpu_custom_call.1} parent=11 // pred_fallthru
          _
      $region12: #{tpu_custom_call.1} parent=5 // pred_fallthru
        _
      %p215 = scmp.lt.s32.totalorder %s18, 2
      // Predicated region
      $region29: #{tpu_custom_call.1} parent=5 // pred_check
        %p216 = pneg %p215
      $region30: #{tpu_custom_call.1} parent=5 // pred_check_branch
        %218 = sbr.rel (%p216) target = $region32
      $region31: #{tpu_custom_call.1} parent=5 // pred_region
        // Predicated region
        $region33: #{tpu_custom_call.1} parent=31 // pred_check
          %p219 = pneg %p50
        $region34: #{tpu_custom_call.1} parent=31 // pred_check_branch
          %221 = sbr.rel (%p219) target = $region36
        $region35: #{tpu_custom_call.1} parent=31 // pred_region
          %s222 = sand.u32 %s40, 1
          %s223 = scalar_lea.sflag [#allocation7], %s222
          %s224 = sand.u32 %s40, 1
          %s225 = smul.addr %s224, 8
          %s226 = scalar_lea.vmem [#allocation6], %s225
          %s228 = ssub.s32 128, 128
          %229 = vsyncadd %s223, %s228
          %s230 = smul.addr %s25, 128
          %s231 = scalar_lea.hbm %s0, %s230
          %s233 = sshll.u32 %s226, 4
          %s234 = int_to_ptr.vmem [resolvable:$true] %s233
          %236 = dma.hbm_to_vmem [thread:$0]  %s231, 128, %s234, %s223
        $region36: #{tpu_custom_call.1} parent=31 // pred_fallthru
          _
      $region32: #{tpu_custom_call.1} parent=5 // pred_fallthru
        _
      %p237 = scmp.le.s32.totalorder 1, %s18
      %p238 = scmp.lt.s32.totalorder %s18, 3
      %p239 = pnand %p237, %p238
      %p240 = pneg %p239
      // Predicated region
      $region37: #{tpu_custom_call.1} parent=5 // pred_check
        _
      $region38: #{tpu_custom_call.1} parent=5 // pred_check_branch
        %242 = sbr.rel (%p239) target = $region40
      $region39: #{tpu_custom_call.1} parent=5 // pred_region
        %s243 = ssub.s32 %s18, 1
        %s244 = sand.u32 %s43, 1
        %s245 = scalar_lea.sflag [#allocation7], %s244
        %s246 = sand.u32 %s43, 1
        %s247 = smul.addr %s246, 8
        %s248 = scalar_lea.vmem [#allocation6], %s247
        // Predicated region
        $region41: #{tpu_custom_call.1} parent=39 // pred_check
          %p249 = pneg %p56
        $region42: #{tpu_custom_call.1} parent=39 // pred_check_branch
          %251 = sbr.rel (%p249) target = $region44
        $region43: #{tpu_custom_call.1} parent=39 // pred_region
          %252 = dma.done %s245, 128
        $region44: #{tpu_custom_call.1} parent=39 // pred_fallthru
          _
        // Predicated region
        $region45: #{tpu_custom_call.1} parent=39 // pred_check
          %p253 = pneg %p77
        $region46: #{tpu_custom_call.1} parent=39 // pred_check_branch
          %255 = sbr.rel (%p253) target = $region48
        $region47: #{tpu_custom_call.1} parent=39 // pred_region
          %256 = dma.done [#allocation10], 512
        $region48: #{tpu_custom_call.1} parent=39 // pred_fallthru
          _
        // Predicated region
        $region49: #{tpu_custom_call.1} parent=39 // pred_check
          %p257 = pneg %p119
        $region50: #{tpu_custom_call.1} parent=39 // pred_check_branch
          %259 = sbr.rel (%p257) target = $region52
        $region51: #{tpu_custom_call.1} parent=39 // pred_region
          %260 = dma.done [#allocation10], 512
        $region52: #{tpu_custom_call.1} parent=39 // pred_fallthru
          _
        %s261 = sand.u32 %s43, 1
        %s262 = scalar_lea.sflag [#allocation7], %s261
        %s263 = sand.u32 %s43, 1
        %s264 = smul.addr %s263, 8
        %s265 = scalar_lea.vmem [#allocation6], %s264
        %p266 = pneg %p56
        %p267 = pneg %p53
        %p268 = pneg %p77
        %p269 = pneg %p74
        %p270 = pneg %p98
        %p271 = pneg %p95
        %p272 = pneg %p119
        %p273 = pneg %p116
        %p274 = pneg %p140
        %p275 = pneg %p137
        %p276 = pneg %p168
        %p277 = pneg %p165
        %s278 = sand.u32 %s155, 1
        %s279 = scalar_lea.sflag [#allocation8], %s278
        %s280 = sand.u32 %s155, 1
        %s281 = smul.addr %s280, 8
        %s282 = scalar_lea.vmem [#allocation12], %s281
        %p283 = scmp.eq.s32.totalorder %s28, 0
        // Predicated region
        $region53: #{tpu_custom_call.1} parent=39 // pred_check
          %p284 = pneg %p283
        $region54: #{tpu_custom_call.1} parent=39 // pred_check_branch
          %286 = sbr.rel (%p284) target = $region56
        $region55: #{tpu_custom_call.1} parent=39 // pred_region
          %v287 = vld [vmem:[%s248] sm:$0xff]
          %v288 = vld [vmem:[#allocation9] sm:$0xff]
          %v289 = vld [vmem:[#allocation9 + $0x8] sm:$0xff]
          %v290 = vld [vmem:[#allocation9 + $0x10] sm:$0xff]
          %v291 = vld [vmem:[#allocation9 + $0x18] sm:$0xff]
          %v292 = vld [vmem:[%s2] sm:$0x1]
          %v294 = vlaneseq
          %v295 = vshrl.u32 %v294, 7
          %v296 = vsub.s32 0, %v295
          %v297 = vrot.slane %v292, %v296
          %vm299 = vcmask 261120
          %v301 = vsel %vm299, %v287, 0
          %303 = vmatprep.subr.mxu0 0.0
          %304 = vmatpush1.msra.mxu0 0.0
          %305 = vmatprep.subr.mxu0 0.0
          %306 = vmatpush1.msra.mxu0 0.0
          %307 = vmatprep.subr.mxu0 0.0
          %308 = vmatpush1.msra.mxu0 0.0
          %309 = vmatprep.subr.mxu0 0.0
          %310 = vmatpush1.msra.mxu0 0.0
          %311 = vmatprep.subr.mxu0 0.0
          %312 = vmatpush1.msra.mxu0 0.0
          %313 = vmatprep.subr.mxu0 0.0
          %314 = vmatpush1.msra.mxu0 0.0
          %315 = vmatprep.subr.mxu0 0.0
          %316 = vmatpush1.msra.mxu0 0.0
          %317 = vmatprep.subr.mxu0 0.0
          %318 = vmatpush1.msra.mxu0 0.0
          %319 = vmatprep.subr.mxu0 0.0
          %320 = vmatpush1.msra.mxu0 0.0
          %321 = vmatprep.subr.mxu0 0.0
          %322 = vmatpush1.msra.mxu0 0.0
          %323 = vmatprep.subr.mxu0 0.0
          %324 = vmatpush1.msra.mxu0 0.0
          %325 = vmatprep.subr.mxu0 0.0
          %326 = vmatpush1.msra.mxu0 0.0
          %327 = vmatprep.subr.mxu0 0.0
          %328 = vmatpush1.msra.mxu0 %v291
          %329 = vmatprep.subr.mxu0 0.0
          %330 = vmatpush1.msra.mxu0 %v290
          %331 = vmatprep.subr.mxu0 0.0
          %332 = vmatpush1.msra.mxu0 %v289
          %333 = vmatprep.subr.mxu0 0.0
          %334 = vmatpush1.msra.mxu0 %v288
          %335 = vmatprep.subr.mxu0 0.0
          %336 = vmatpush2.msra.mxu0 0.0
          %337 = vmatprep.subr.mxu0 0.0
          %338 = vmatpush2.msra.mxu0 0.0
          %339 = vmatprep.subr.mxu0 0.0
          %340 = vmatpush2.msra.mxu0 0.0
          %341 = vmatprep.subr.mxu0 0.0
          %342 = vmatpush2.msra.mxu0 0.0
          %343 = vmatprep.subr.mxu0 0.0
          %344 = vmatpush2.msra.mxu0 0.0
          %345 = vmatprep.subr.mxu0 0.0
          %346 = vmatpush2.msra.mxu0 0.0
          %347 = vmatprep.subr.mxu0 0.0
          %348 = vmatpush2.msra.mxu0 0.0
          %349 = vmatprep.subr.mxu0 0.0
          %350 = vmatpush2.msra.mxu0 0.0
          %351 = vmatprep.subr.mxu0 0.0
          %352 = vmatpush2.msra.mxu0 0.0
          %353 = vmatprep.subr.mxu0 0.0
          %354 = vmatpush2.msra.mxu0 0.0
          %355 = vmatprep.subr.mxu0 0.0
          %356 = vmatpush2.msra.mxu0 0.0
          %357 = vmatprep.subr.mxu0 0.0
          %358 = vmatpush2.msra.mxu0 0.0
          %359 = vmatprep.subr.mxu0 0.0
          %360 = vmatpush2.msra.mxu0 0.0
          %361 = vmatprep.subr.mxu0 0.0
          %362 = vmatpush2.msra.mxu0 0.0
          %363 = vmatprep.subr.mxu0 0.0
          %364 = vmatpush2.msra.mxu0 0.0
          %365 = vmatprep.subr.mxu0 0.0
          %366 = vmatpush2.msra.mxu0 0.0
          %367 = vmatprep.mubr.f32.mxu0 0.0
          %368 = vmatmul.mubr.f32.gmra.mxu0 %v301
          %v369 = vpop.f32.mrf.mxu0
          %v370 = vadd.f32 %v297, %v369
          %v371 = vpop.f32.mrf.mxu0
          %372 = vdwg.mxu0
          %vm373 = vcmask 64512
          %374 = vst.msk [vmem:[#allocation2] sm:$0xff] %vm373, %v370
          %376 = vrot.lane.b32.xlu0 %v370, 96
          %v377 = vpop.permute.xlu0 %376
          %379 = vst.msk [vmem:[#allocation3] sm:$0xff] %vm373, %v377
          %380 = vrot.lane.b32.xlu0 %v370, 64
          %v381 = vpop.permute.xlu0 %380
          %383 = vst.msk [vmem:[#allocation4] sm:$0xff] %vm373, %v381
          %384 = vrot.lane.b32.xlu0 %v370, 120
          %v385 = vpop.permute.xlu0 %384
          %s387 = scalar_lea.vmem [#allocation2], 8
          %388 = vst.msk [vmem:[%s387] sm:$0xff] %vm373, %v385
          %389 = vrot.lane.b32.xlu0 %v370, 88
          %v390 = vpop.permute.xlu0 %389
          %s392 = scalar_lea.vmem [#allocation3], 8
          %393 = vst.msk [vmem:[%s392] sm:$0xff] %vm373, %v390
          %394 = vrot.lane.b32.xlu0 %v370, 56
          %v395 = vpop.permute.xlu0 %394
          %s397 = scalar_lea.vmem [#allocation4], 8
          %398 = vst.msk [vmem:[%s397] sm:$0xff] %vm373, %v395
          %399 = vrot.lane.b32.xlu0 %v370, 112
          %v400 = vpop.permute.xlu0 %399
          %s402 = scalar_lea.vmem [#allocation2], 16
          %403 = vst.msk [vmem:[%s402] sm:$0xff] %vm373, %v400
          %404 = vrot.lane.b32.xlu0 %v370, 80
          %v405 = vpop.permute.xlu0 %404
          %s407 = scalar_lea.vmem [#allocation3], 16
          %408 = vst.msk [vmem:[%s407] sm:$0xff] %vm373, %v405
          %409 = vrot.lane.b32.xlu0 %v370, 48
          %v410 = vpop.permute.xlu0 %409
          %s412 = scalar_lea.vmem [#allocation4], 16
          %413 = vst.msk [vmem:[%s412] sm:$0xff] %vm373, %v410
          %414 = vrot.lane.b32.xlu0 %v370, 104
          %v415 = vpop.permute.xlu0 %414
          %s417 = scalar_lea.vmem [#allocation2], 24
          %418 = vst.msk [vmem:[%s417] sm:$0xff] %vm373, %v415
          %419 = vrot.lane.b32.xlu0 %v370, 72
          %v420 = vpop.permute.xlu0 %419
          %s422 = scalar_lea.vmem [#allocation3], 24
          %423 = vst.msk [vmem:[%s422] sm:$0xff] %vm373, %v420
          %424 = vrot.lane.b32.xlu0 %v370, 40
          %v425 = vpop.permute.xlu0 %424
          %s427 = scalar_lea.vmem [#allocation4], 24
          %428 = vst.msk [vmem:[%s427] sm:$0xff] %vm373, %v425
        $region56: #{tpu_custom_call.1} parent=39 // pred_fallthru
          _
        %v429 = vld [vmem:[#allocation2] sm:$0xff]
        %v430 = vld [vmem:[#allocation2 + $0x8] sm:$0xff]
        %v431 = vld [vmem:[#allocation2 + $0x10] sm:$0xff]
        %v432 = vld [vmem:[#allocation2 + $0x18] sm:$0xff]
        %v433 = vld [vmem:[#allocation3] sm:$0xff]
        %v434 = vld [vmem:[#allocation3 + $0x8] sm:$0xff]
        %v435 = vld [vmem:[#allocation3 + $0x10] sm:$0xff]
        %v436 = vld [vmem:[#allocation3 + $0x18] sm:$0xff]
        %v437 = vld [vmem:[#allocation4] sm:$0xff]
        %v438 = vld [vmem:[#allocation4 + $0x8] sm:$0xff]
        %v439 = vld [vmem:[#allocation4 + $0x10] sm:$0xff]
        %v440 = vld [vmem:[#allocation4 + $0x18] sm:$0xff]
        %vm441 = vcmask 64512
        %v443 = vsel %vm441, %v429, 0
        %v446 = vsel %vm441, %v433, 0
        %448 = vmatprep.subr.mxu0 0.0
        %449 = vmatpush1.xpose.msra.mxu0 0.0
        %450 = vmatprep.subr.mxu0 0.0
        %451 = vmatpush1.xpose.msra.mxu0 0.0
        %452 = vmatprep.subr.mxu0 0.0
        %453 = vmatpush1.xpose.msra.mxu0 0.0
        %454 = vmatprep.subr.mxu0 0.0
        %455 = vmatpush1.xpose.msra.mxu0 0.0
        %456 = vmatprep.subr.mxu0 0.0
        %457 = vmatpush1.xpose.msra.mxu0 0.0
        %458 = vmatprep.subr.mxu0 0.0
        %459 = vmatpush1.xpose.msra.mxu0 0.0
        %460 = vmatprep.subr.mxu0 0.0
        %461 = vmatpush1.xpose.msra.mxu0 0.0
        %462 = vmatprep.subr.mxu0 0.0
        %463 = vmatpush1.xpose.msra.mxu0 0.0
        %464 = vmatprep.subr.mxu0 0.0
        %465 = vmatpush1.xpose.msra.mxu0 0.0
        %466 = vmatprep.subr.mxu0 0.0
        %467 = vmatpush1.xpose.msra.mxu0 0.0
        %468 = vmatprep.subr.mxu0 0.0
        %469 = vmatpush1.xpose.msra.mxu0 0.0
        %470 = vmatprep.subr.mxu0 0.0
        %471 = vmatpush1.xpose.msra.mxu0 0.0
        %472 = vmatprep.subr.mxu0 0.0
        %473 = vmatpush1.xpose.msra.mxu0 0.0
        %474 = vmatprep.subr.mxu0 0.0
        %475 = vmatpush1.xpose.msra.mxu0 0.0
        %476 = vmatprep.subr.mxu0 0.0
        %477 = vmatpush1.xpose.msra.mxu0 0.0
        %478 = vmatprep.subr.mxu0 0.0
        %479 = vmatpush1.xpose.msra.mxu0 %v446
        %480 = vmatprep.subr.mxu0 0.0
        %481 = vmatpush2.xpose.msra.mxu0 0.0
        %482 = vmatprep.subr.mxu0 0.0
        %483 = vmatpush2.xpose.msra.mxu0 0.0
        %484 = vmatprep.subr.mxu0 0.0
        %485 = vmatpush2.xpose.msra.mxu0 0.0
        %486 = vmatprep.subr.mxu0 0.0
        %487 = vmatpush2.xpose.msra.mxu0 0.0
        %488 = vmatprep.subr.mxu0 0.0
        %489 = vmatpush2.xpose.msra.mxu0 0.0
        %490 = vmatprep.subr.mxu0 0.0
        %491 = vmatpush2.xpose.msra.mxu0 0.0
        %492 = vmatprep.subr.mxu0 0.0
        %493 = vmatpush2.xpose.msra.mxu0 0.0
        %494 = vmatprep.subr.mxu0 0.0
        %495 = vmatpush2.xpose.msra.mxu0 0.0
        %496 = vmatprep.subr.mxu0 0.0
        %497 = vmatpush2.xpose.msra.mxu0 0.0
        %498 = vmatprep.subr.mxu0 0.0
        %499 = vmatpush2.xpose.msra.mxu0 0.0
        %500 = vmatprep.subr.mxu0 0.0
        %501 = vmatpush2.xpose.msra.mxu0 0.0
        %502 = vmatprep.subr.mxu0 0.0
        %503 = vmatpush2.xpose.msra.mxu0 0.0
        %504 = vmatprep.subr.mxu0 0.0
        %505 = vmatpush2.xpose.msra.mxu0 0.0
        %506 = vmatprep.subr.mxu0 0.0
        %507 = vmatpush2.xpose.msra.mxu0 0.0
        %508 = vmatprep.subr.mxu0 0.0
        %509 = vmatpush2.xpose.msra.mxu0 0.0
        %510 = vmatprep.subr.mxu0 0.0
        %511 = vmatpush2.xpose.msra.mxu0 0.0
        %512 = vmatprep.mubr.f32.mxu0 0.0
        %513 = vmatmul.mubr.f32.gmra.mxu0 %v443
        %v514 = vpop.f32.mrf.mxu0
        %v515 = vadd.f32 0.0, %v514
        %v516 = vpop.f32.mrf.mxu0
        %517 = vdwg.mxu0
        %v519 = vsel %vm441, %v430, 0
        %v522 = vsel %vm441, %v434, 0
        %524 = vmatprep.subr.mxu0 0.0
        %525 = vmatpush1.xpose.msra.mxu0 0.0
        %526 = vmatprep.subr.mxu0 0.0
        %527 = vmatpush1.xpose.msra.mxu0 0.0
        %528 = vmatprep.subr.mxu0 0.0
        %529 = vmatpush1.xpose.msra.mxu0 0.0
        %530 = vmatprep.subr.mxu0 0.0
        %531 = vmatpush1.xpose.msra.mxu0 0.0
        %532 = vmatprep.subr.mxu0 0.0
        %533 = vmatpush1.xpose.msra.mxu0 0.0
        %534 = vmatprep.subr.mxu0 0.0
        %535 = vmatpush1.xpose.msra.mxu0 0.0
        %536 = vmatprep.subr.mxu0 0.0
        %537 = vmatpush1.xpose.msra.mxu0 0.0
        %538 = vmatprep.subr.mxu0 0.0
        %539 = vmatpush1.xpose.msra.mxu0 0.0
        %540 = vmatprep.subr.mxu0 0.0
        %541 = vmatpush1.xpose.msra.mxu0 0.0
        %542 = vmatprep.subr.mxu0 0.0
        %543 = vmatpush1.xpose.msra.mxu0 0.0
        %544 = vmatprep.subr.mxu0 0.0
        %545 = vmatpush1.xpose.msra.mxu0 0.0
        %546 = vmatprep.subr.mxu0 0.0
        %547 = vmatpush1.xpose.msra.mxu0 0.0
        %548 = vmatprep.subr.mxu0 0.0
        %549 = vmatpush1.xpose.msra.mxu0 0.0
        %550 = vmatprep.subr.mxu0 0.0
        %551 = vmatpush1.xpose.msra.mxu0 0.0
        %552 = vmatprep.subr.mxu0 0.0
        %553 = vmatpush1.xpose.msra.mxu0 0.0
        %554 = vmatprep.subr.mxu0 0.0
        %555 = vmatpush1.xpose.msra.mxu0 %v522
        %556 = vmatprep.subr.mxu0 0.0
        %557 = vmatpush2.xpose.msra.mxu0 0.0
        %558 = vmatprep.subr.mxu0 0.0
        %559 = vmatpush2.xpose.msra.mxu0 0.0
        %560 = vmatprep.subr.mxu0 0.0
        %561 = vmatpush2.xpose.msra.mxu0 0.0
        %562 = vmatprep.subr.mxu0 0.0
        %563 = vmatpush2.xpose.msra.mxu0 0.0
        %564 = vmatprep.subr.mxu0 0.0
        %565 = vmatpush2.xpose.msra.mxu0 0.0
        %566 = vmatprep.subr.mxu0 0.0
        %567 = vmatpush2.xpose.msra.mxu0 0.0
        %568 = vmatprep.subr.mxu0 0.0
        %569 = vmatpush2.xpose.msra.mxu0 0.0
        %570 = vmatprep.subr.mxu0 0.0
        %571 = vmatpush2.xpose.msra.mxu0 0.0
        %572 = vmatprep.subr.mxu0 0.0
        %573 = vmatpush2.xpose.msra.mxu0 0.0
        %574 = vmatprep.subr.mxu0 0.0
        %575 = vmatpush2.xpose.msra.mxu0 0.0
        %576 = vmatprep.subr.mxu0 0.0
        %577 = vmatpush2.xpose.msra.mxu0 0.0
        %578 = vmatprep.subr.mxu0 0.0
        %579 = vmatpush2.xpose.msra.mxu0 0.0
        %580 = vmatprep.subr.mxu0 0.0
        %581 = vmatpush2.xpose.msra.mxu0 0.0
        %582 = vmatprep.subr.mxu0 0.0
        %583 = vmatpush2.xpose.msra.mxu0 0.0
        %584 = vmatprep.subr.mxu0 0.0
        %585 = vmatpush2.xpose.msra.mxu0 0.0
        %586 = vmatprep.subr.mxu0 0.0
        %587 = vmatpush2.xpose.msra.mxu0 0.0
        %588 = vmatprep.mubr.f32.mxu0 0.0
        %589 = vmatmul.mubr.f32.gmra.mxu0 %v519
        %v590 = vpop.f32.mrf.mxu0
        %v591 = vadd.f32 0.0, %v590
        %v592 = vpop.f32.mrf.mxu0
        %593 = vdwg.mxu0
        %v595 = vsel %vm441, %v431, 0
        %v598 = vsel %vm441, %v435, 0
        %600 = vmatprep.subr.mxu0 0.0
        %601 = vmatpush1.xpose.msra.mxu0 0.0
        %602 = vmatprep.subr.mxu0 0.0
        %603 = vmatpush1.xpose.msra.mxu0 0.0
        %604 = vmatprep.subr.mxu0 0.0
        %605 = vmatpush1.xpose.msra.mxu0 0.0
        %606 = vmatprep.subr.mxu0 0.0
        %607 = vmatpush1.xpose.msra.mxu0 0.0
        %608 = vmatprep.subr.mxu0 0.0
        %609 = vmatpush1.xpose.msra.mxu0 0.0
        %610 = vmatprep.subr.mxu0 0.0
        %611 = vmatpush1.xpose.msra.mxu0 0.0
        %612 = vmatprep.subr.mxu0 0.0
        %613 = vmatpush1.xpose.msra.mxu0 0.0
        %614 = vmatprep.subr.mxu0 0.0
        %615 = vmatpush1.xpose.msra.mxu0 0.0
        %616 = vmatprep.subr.mxu0 0.0
        %617 = vmatpush1.xpose.msra.mxu0 0.0
        %618 = vmatprep.subr.mxu0 0.0
        %619 = vmatpush1.xpose.msra.mxu0 0.0
        %620 = vmatprep.subr.mxu0 0.0
        %621 = vmatpush1.xpose.msra.mxu0 0.0
        %622 = vmatprep.subr.mxu0 0.0
        %623 = vmatpush1.xpose.msra.mxu0 0.0
        %624 = vmatprep.subr.mxu0 0.0
        %625 = vmatpush1.xpose.msra.mxu0 0.0
        %626 = vmatprep.subr.mxu0 0.0
        %627 = vmatpush1.xpose.msra.mxu0 0.0
        %628 = vmatprep.subr.mxu0 0.0
        %629 = vmatpush1.xpose.msra.mxu0 0.0
        %630 = vmatprep.subr.mxu0 0.0
        %631 = vmatpush1.xpose.msra.mxu0 %v598
        %632 = vmatprep.subr.mxu0 0.0
        %633 = vmatpush2.xpose.msra.mxu0 0.0
        %634 = vmatprep.subr.mxu0 0.0
        %635 = vmatpush2.xpose.msra.mxu0 0.0
        %636 = vmatprep.subr.mxu0 0.0
        %637 = vmatpush2.xpose.msra.mxu0 0.0
        %638 = vmatprep.subr.mxu0 0.0
        %639 = vmatpush2.xpose.msra.mxu0 0.0
        %640 = vmatprep.subr.mxu0 0.0
        %641 = vmatpush2.xpose.msra.mxu0 0.0
        %642 = vmatprep.subr.mxu0 0.0
        %643 = vmatpush2.xpose.msra.mxu0 0.0
        %644 = vmatprep.subr.mxu0 0.0
        %645 = vmatpush2.xpose.msra.mxu0 0.0
        %646 = vmatprep.subr.mxu0 0.0
        %647 = vmatpush2.xpose.msra.mxu0 0.0
        %648 = vmatprep.subr.mxu0 0.0
        %649 = vmatpush2.xpose.msra.mxu0 0.0
        %650 = vmatprep.subr.mxu0 0.0
        %651 = vmatpush2.xpose.msra.mxu0 0.0
        %652 = vmatprep.subr.mxu0 0.0
        %653 = vmatpush2.xpose.msra.mxu0 0.0
        %654 = vmatprep.subr.mxu0 0.0
        %655 = vmatpush2.xpose.msra.mxu0 0.0
        %656 = vmatprep.subr.mxu0 0.0
        %657 = vmatpush2.xpose.msra.mxu0 0.0
        %658 = vmatprep.subr.mxu0 0.0
        %659 = vmatpush2.xpose.msra.mxu0 0.0
        %660 = vmatprep.subr.mxu0 0.0
        %661 = vmatpush2.xpose.msra.mxu0 0.0
        %662 = vmatprep.subr.mxu0 0.0
        %663 = vmatpush2.xpose.msra.mxu0 0.0
        %664 = vmatprep.mubr.f32.mxu0 0.0
        %665 = vmatmul.mubr.f32.gmra.mxu0 %v595
        %v666 = vpop.f32.mrf.mxu0
        %v667 = vadd.f32 0.0, %v666
        %v668 = vpop.f32.mrf.mxu0
        %669 = vdwg.mxu0
        %v671 = vsel %vm441, %v432, 0
        %v674 = vsel %vm441, %v436, 0
        %676 = vmatprep.subr.mxu0 0.0
        %677 = vmatpush1.xpose.msra.mxu0 0.0
        %678 = vmatprep.subr.mxu0 0.0
        %679 = vmatpush1.xpose.msra.mxu0 0.0
        %680 = vmatprep.subr.mxu0 0.0
        %681 = vmatpush1.xpose.msra.mxu0 0.0
        %682 = vmatprep.subr.mxu0 0.0
        %683 = vmatpush1.xpose.msra.mxu0 0.0
        %684 = vmatprep.subr.mxu0 0.0
        %685 = vmatpush1.xpose.msra.mxu0 0.0
        %686 = vmatprep.subr.mxu0 0.0
        %687 = vmatpush1.xpose.msra.mxu0 0.0
        %688 = vmatprep.subr.mxu0 0.0
        %689 = vmatpush1.xpose.msra.mxu0 0.0
        %690 = vmatprep.subr.mxu0 0.0
        %691 = vmatpush1.xpose.msra.mxu0 0.0
        %692 = vmatprep.subr.mxu0 0.0
        %693 = vmatpush1.xpose.msra.mxu0 0.0
        %694 = vmatprep.subr.mxu0 0.0
        %695 = vmatpush1.xpose.msra.mxu0 0.0
        %696 = vmatprep.subr.mxu0 0.0
        %697 = vmatpush1.xpose.msra.mxu0 0.0
        %698 = vmatprep.subr.mxu0 0.0
        %699 = vmatpush1.xpose.msra.mxu0 0.0
        %700 = vmatprep.subr.mxu0 0.0
        %701 = vmatpush1.xpose.msra.mxu0 0.0
        %702 = vmatprep.subr.mxu0 0.0
        %703 = vmatpush1.xpose.msra.mxu0 0.0
        %704 = vmatprep.subr.mxu0 0.0
        %705 = vmatpush1.xpose.msra.mxu0 0.0
        %706 = vmatprep.subr.mxu0 0.0
        %707 = vmatpush1.xpose.msra.mxu0 %v674
        %708 = vmatprep.subr.mxu0 0.0
        %709 = vmatpush2.xpose.msra.mxu0 0.0
        %710 = vmatprep.subr.mxu0 0.0
        %711 = vmatpush2.xpose.msra.mxu0 0.0
        %712 = vmatprep.subr.mxu0 0.0
        %713 = vmatpush2.xpose.msra.mxu0 0.0
        %714 = vmatprep.subr.mxu0 0.0
        %715 = vmatpush2.xpose.msra.mxu0 0.0
        %716 = vmatprep.subr.mxu0 0.0
        %717 = vmatpush2.xpose.msra.mxu0 0.0
        %718 = vmatprep.subr.mxu0 0.0
        %719 = vmatpush2.xpose.msra.mxu0 0.0
        %720 = vmatprep.subr.mxu0 0.0
        %721 = vmatpush2.xpose.msra.mxu0 0.0
        %722 = vmatprep.subr.mxu0 0.0
        %723 = vmatpush2.xpose.msra.mxu0 0.0
        %724 = vmatprep.subr.mxu0 0.0
        %725 = vmatpush2.xpose.msra.mxu0 0.0
        %726 = vmatprep.subr.mxu0 0.0
        %727 = vmatpush2.xpose.msra.mxu0 0.0
        %728 = vmatprep.subr.mxu0 0.0
        %729 = vmatpush2.xpose.msra.mxu0 0.0
        %730 = vmatprep.subr.mxu0 0.0
        %731 = vmatpush2.xpose.msra.mxu0 0.0
        %732 = vmatprep.subr.mxu0 0.0
        %733 = vmatpush2.xpose.msra.mxu0 0.0
        %734 = vmatprep.subr.mxu0 0.0
        %735 = vmatpush2.xpose.msra.mxu0 0.0
        %736 = vmatprep.subr.mxu0 0.0
        %737 = vmatpush2.xpose.msra.mxu0 0.0
        %738 = vmatprep.subr.mxu0 0.0
        %739 = vmatpush2.xpose.msra.mxu0 0.0
        %740 = vmatprep.mubr.f32.mxu0 0.0
        %741 = vmatmul.mubr.f32.gmra.mxu0 %v671
        %v742 = vpop.f32.mrf.mxu0
        %v743 = vadd.f32 0.0, %v742
        %v744 = vpop.f32.mrf.mxu0
        %745 = vdwg.mxu0
        %v746 = vmul.f32 %v515, 0.35355338
        %v747 = vmul.f32 %v591, 0.35355338
        %v748 = vmul.f32 %v667, 0.35355338
        %v749 = vmul.f32 %v743, 0.35355338
        %v750 = vsel %vm441, %v746, -inf
        %751 = vmax.xlane.f32.xlu0 %v750
        %v752 = vpop.xlane.xlu0 %751
        %v753 = vsel %vm441, %v747, -inf
        %754 = vmax.xlane.f32.xlu0 %v753
        %v755 = vpop.xlane.xlu0 %754
        %v756 = vsel %vm441, %v748, -inf
        %757 = vmax.xlane.f32.xlu0 %v756
        %v758 = vpop.xlane.xlu0 %757
        %v759 = vsel %vm441, %v749, -inf
        %760 = vmax.xlane.f32.xlu0 %v759
        %v761 = vpop.xlane.xlu0 %760
        %v762 = vsub.f32 %v746, %v752
        %v763 = vsub.f32 %v747, %v755
        %v764 = vsub.f32 %v748, %v758
        %v765 = vsub.f32 %v749, %v761
        %v766 = vmul.f32 %v762, 1.442695
        %v767 = vpow.pop %v766
        %v768 = vmul.f32 %v763, 1.442695
        %v769 = vpow.pop %v768
        %v770 = vmul.f32 %v764, 1.442695
        %v771 = vpow.pop %v770
        %v772 = vmul.f32 %v765, 1.442695
        %v773 = vpow.pop %v772
        %v774 = vsel %vm441, %v767, 0.0
        %775 = vadd.xlane.f32.xlu0 %v774
        %v776 = vpop.xlane.xlu0 %775
        %v777 = vsel %vm441, %v769, 0.0
        %778 = vadd.xlane.f32.xlu0 %v777
        %v779 = vpop.xlane.xlu0 %778
        %v780 = vsel %vm441, %v771, 0.0
        %781 = vadd.xlane.f32.xlu0 %v780
        %v782 = vpop.xlane.xlu0 %781
        %v783 = vsel %vm441, %v773, 0.0
        %784 = vadd.xlane.f32.xlu0 %v783
        %v785 = vpop.xlane.xlu0 %784
        %v786 = vrcp.pop %v776
        %v787 = vrcp.pop %v779
        %v788 = vrcp.pop %v782
        %v789 = vrcp.pop %v785
        %v790 = vmul.f32 %v767, %v786
        %v791 = vmul.f32 %v769, %v787
        %v792 = vmul.f32 %v771, %v788
        %v793 = vmul.f32 %v773, %v789
        %v795 = vsel %vm441, %v790, 0
        %797 = vmatprep.subr.mxu0 0.0
        %798 = vmatpush1.msra.mxu0 0.0
        %799 = vmatprep.subr.mxu0 0.0
        %800 = vmatpush1.msra.mxu0 0.0
        %801 = vmatprep.subr.mxu0 0.0
        %802 = vmatpush1.msra.mxu0 0.0
        %803 = vmatprep.subr.mxu0 0.0
        %804 = vmatpush1.msra.mxu0 0.0
        %805 = vmatprep.subr.mxu0 0.0
        %806 = vmatpush1.msra.mxu0 0.0
        %807 = vmatprep.subr.mxu0 0.0
        %808 = vmatpush1.msra.mxu0 0.0
        %809 = vmatprep.subr.mxu0 0.0
        %810 = vmatpush1.msra.mxu0 0.0
        %811 = vmatprep.subr.mxu0 0.0
        %812 = vmatpush1.msra.mxu0 0.0
        %813 = vmatprep.subr.mxu0 0.0
        %814 = vmatpush1.msra.mxu0 0.0
        %815 = vmatprep.subr.mxu0 0.0
        %816 = vmatpush1.msra.mxu0 0.0
        %817 = vmatprep.subr.mxu0 0.0
        %818 = vmatpush1.msra.mxu0 0.0
        %819 = vmatprep.subr.mxu0 0.0
        %820 = vmatpush1.msra.mxu0 0.0
        %821 = vmatprep.subr.mxu0 0.0
        %822 = vmatpush1.msra.mxu0 0.0
        %823 = vmatprep.subr.mxu0 0.0
        %824 = vmatpush1.msra.mxu0 0.0
        %825 = vmatprep.subr.mxu0 0.0
        %826 = vmatpush1.msra.mxu0 0.0
        %827 = vmatprep.subr.mxu0 0.0
        %828 = vmatpush1.msra.mxu0 %v437
        %829 = vmatprep.subr.mxu0 0.0
        %830 = vmatpush2.msra.mxu0 0.0
        %831 = vmatprep.subr.mxu0 0.0
        %832 = vmatpush2.msra.mxu0 0.0
        %833 = vmatprep.subr.mxu0 0.0
        %834 = vmatpush2.msra.mxu0 0.0
        %835 = vmatprep.subr.mxu0 0.0
        %836 = vmatpush2.msra.mxu0 0.0
        %837 = vmatprep.subr.mxu0 0.0
        %838 = vmatpush2.msra.mxu0 0.0
        %839 = vmatprep.subr.mxu0 0.0
        %840 = vmatpush2.msra.mxu0 0.0
        %841 = vmatprep.subr.mxu0 0.0
        %842 = vmatpush2.msra.mxu0 0.0
        %843 = vmatprep.subr.mxu0 0.0
        %844 = vmatpush2.msra.mxu0 0.0
        %845 = vmatprep.subr.mxu0 0.0
        %846 = vmatpush2.msra.mxu0 0.0
        %847 = vmatprep.subr.mxu0 0.0
        %848 = vmatpush2.msra.mxu0 0.0
        %849 = vmatprep.subr.mxu0 0.0
        %850 = vmatpush2.msra.mxu0 0.0
        %851 = vmatprep.subr.mxu0 0.0
        %852 = vmatpush2.msra.mxu0 0.0
        %853 = vmatprep.subr.mxu0 0.0
        %854 = vmatpush2.msra.mxu0 0.0
        %855 = vmatprep.subr.mxu0 0.0
        %856 = vmatpush2.msra.mxu0 0.0
        %857 = vmatprep.subr.mxu0 0.0
        %858 = vmatpush2.msra.mxu0 0.0
        %859 = vmatprep.subr.mxu0 0.0
        %860 = vmatpush2.msra.mxu0 0.0
        %861 = vmatprep.mubr.f32.mxu0 0.0
        %862 = vmatmul.mubr.f32.gmra.mxu0 %v795
        %v863 = vpop.f32.mrf.mxu0
        %v864 = vadd.f32 0.0, %v863
        %v865 = vpop.f32.mrf.mxu0
        %866 = vdwg.mxu0
        %v868 = vsel %vm441, %v791, 0
        %870 = vmatprep.subr.mxu0 0.0
        %871 = vmatpush1.msra.mxu0 0.0
        %872 = vmatprep.subr.mxu0 0.0
        %873 = vmatpush1.msra.mxu0 0.0
        %874 = vmatprep.subr.mxu0 0.0
        %875 = vmatpush1.msra.mxu0 0.0
        %876 = vmatprep.subr.mxu0 0.0
        %877 = vmatpush1.msra.mxu0 0.0
        %878 = vmatprep.subr.mxu0 0.0
        %879 = vmatpush1.msra.mxu0 0.0
        %880 = vmatprep.subr.mxu0 0.0
        %881 = vmatpush1.msra.mxu0 0.0
        %882 = vmatprep.subr.mxu0 0.0
        %883 = vmatpush1.msra.mxu0 0.0
        %884 = vmatprep.subr.mxu0 0.0
        %885 = vmatpush1.msra.mxu0 0.0
        %886 = vmatprep.subr.mxu0 0.0
        %887 = vmatpush1.msra.mxu0 0.0
        %888 = vmatprep.subr.mxu0 0.0
        %889 = vmatpush1.msra.mxu0 0.0
        %890 = vmatprep.subr.mxu0 0.0
        %891 = vmatpush1.msra.mxu0 0.0
        %892 = vmatprep.subr.mxu0 0.0
        %893 = vmatpush1.msra.mxu0 0.0
        %894 = vmatprep.subr.mxu0 0.0
        %895 = vmatpush1.msra.mxu0 0.0
        %896 = vmatprep.subr.mxu0 0.0
        %897 = vmatpush1.msra.mxu0 0.0
        %898 = vmatprep.subr.mxu0 0.0
        %899 = vmatpush1.msra.mxu0 0.0
        %900 = vmatprep.subr.mxu0 0.0
        %901 = vmatpush1.msra.mxu0 %v438
        %902 = vmatprep.subr.mxu0 0.0
        %903 = vmatpush2.msra.mxu0 0.0
        %904 = vmatprep.subr.mxu0 0.0
        %905 = vmatpush2.msra.mxu0 0.0
        %906 = vmatprep.subr.mxu0 0.0
        %907 = vmatpush2.msra.mxu0 0.0
        %908 = vmatprep.subr.mxu0 0.0
        %909 = vmatpush2.msra.mxu0 0.0
        %910 = vmatprep.subr.mxu0 0.0
        %911 = vmatpush2.msra.mxu0 0.0
        %912 = vmatprep.subr.mxu0 0.0
        %913 = vmatpush2.msra.mxu0 0.0
        %914 = vmatprep.subr.mxu0 0.0
        %915 = vmatpush2.msra.mxu0 0.0
        %916 = vmatprep.subr.mxu0 0.0
        %917 = vmatpush2.msra.mxu0 0.0
        %918 = vmatprep.subr.mxu0 0.0
        %919 = vmatpush2.msra.mxu0 0.0
        %920 = vmatprep.subr.mxu0 0.0
        %921 = vmatpush2.msra.mxu0 0.0
        %922 = vmatprep.subr.mxu0 0.0
        %923 = vmatpush2.msra.mxu0 0.0
        %924 = vmatprep.subr.mxu0 0.0
        %925 = vmatpush2.msra.mxu0 0.0
        %926 = vmatprep.subr.mxu0 0.0
        %927 = vmatpush2.msra.mxu0 0.0
        %928 = vmatprep.subr.mxu0 0.0
        %929 = vmatpush2.msra.mxu0 0.0
        %930 = vmatprep.subr.mxu0 0.0
        %931 = vmatpush2.msra.mxu0 0.0
        %932 = vmatprep.subr.mxu0 0.0
        %933 = vmatpush2.msra.mxu0 0.0
        %934 = vmatprep.mubr.f32.mxu0 0.0
        %935 = vmatmul.mubr.f32.gmra.mxu0 %v868
        %v936 = vpop.f32.mrf.mxu0
        %v937 = vadd.f32 0.0, %v936
        %v938 = vpop.f32.mrf.mxu0
        %939 = vdwg.mxu0
        %v941 = vsel %vm441, %v792, 0
        %943 = vmatprep.subr.mxu0 0.0
        %944 = vmatpush1.msra.mxu0 0.0
        %945 = vmatprep.subr.mxu0 0.0
        %946 = vmatpush1.msra.mxu0 0.0
        %947 = vmatprep.subr.mxu0 0.0
        %948 = vmatpush1.msra.mxu0 0.0
        %949 = vmatprep.subr.mxu0 0.0
        %950 = vmatpush1.msra.mxu0 0.0
        %951 = vmatprep.subr.mxu0 0.0
        %952 = vmatpush1.msra.mxu0 0.0
        %953 = vmatprep.subr.mxu0 0.0
        %954 = vmatpush1.msra.mxu0 0.0
        %955 = vmatprep.subr.mxu0 0.0
        %956 = vmatpush1.msra.mxu0 0.0
        %957 = vmatprep.subr.mxu0 0.0
        %958 = vmatpush1.msra.mxu0 0.0
        %959 = vmatprep.subr.mxu0 0.0
        %960 = vmatpush1.msra.mxu0 0.0
        %961 = vmatprep.subr.mxu0 0.0
        %962 = vmatpush1.msra.mxu0 0.0
        %963 = vmatprep.subr.mxu0 0.0
        %964 = vmatpush1.msra.mxu0 0.0
        %965 = vmatprep.subr.mxu0 0.0
        %966 = vmatpush1.msra.mxu0 0.0
        %967 = vmatprep.subr.mxu0 0.0
        %968 = vmatpush1.msra.mxu0 0.0
        %969 = vmatprep.subr.mxu0 0.0
        %970 = vmatpush1.msra.mxu0 0.0
        %971 = vmatprep.subr.mxu0 0.0
        %972 = vmatpush1.msra.mxu0 0.0
        %973 = vmatprep.subr.mxu0 0.0
        %974 = vmatpush1.msra.mxu0 %v439
        %975 = vmatprep.subr.mxu0 0.0
        %976 = vmatpush2.msra.mxu0 0.0
        %977 = vmatprep.subr.mxu0 0.0
        %978 = vmatpush2.msra.mxu0 0.0
        %979 = vmatprep.subr.mxu0 0.0
        %980 = vmatpush2.msra.mxu0 0.0
        %981 = vmatprep.subr.mxu0 0.0
        %982 = vmatpush2.msra.mxu0 0.0
        %983 = vmatprep.subr.mxu0 0.0
        %984 = vmatpush2.msra.mxu0 0.0
        %985 = vmatprep.subr.mxu0 0.0
        %986 = vmatpush2.msra.mxu0 0.0
        %987 = vmatprep.subr.mxu0 0.0
        %988 = vmatpush2.msra.mxu0 0.0
        %989 = vmatprep.subr.mxu0 0.0
        %990 = vmatpush2.msra.mxu0 0.0
        %991 = vmatprep.subr.mxu0 0.0
        %992 = vmatpush2.msra.mxu0 0.0
        %993 = vmatprep.subr.mxu0 0.0
        %994 = vmatpush2.msra.mxu0 0.0
        %995 = vmatprep.subr.mxu0 0.0
        %996 = vmatpush2.msra.mxu0 0.0
        %997 = vmatprep.subr.mxu0 0.0
        %998 = vmatpush2.msra.mxu0 0.0
        %999 = vmatprep.subr.mxu0 0.0
        %1000 = vmatpush2.msra.mxu0 0.0
        %1001 = vmatprep.subr.mxu0 0.0
        %1002 = vmatpush2.msra.mxu0 0.0
        %1003 = vmatprep.subr.mxu0 0.0
        %1004 = vmatpush2.msra.mxu0 0.0
        %1005 = vmatprep.subr.mxu0 0.0
        %1006 = vmatpush2.msra.mxu0 0.0
        %1007 = vmatprep.mubr.f32.mxu0 0.0
        %1008 = vmatmul.mubr.f32.gmra.mxu0 %v941
        %v1009 = vpop.f32.mrf.mxu0
        %v1010 = vadd.f32 0.0, %v1009
        %v1011 = vpop.f32.mrf.mxu0
        %1012 = vdwg.mxu0
        %v1014 = vsel %vm441, %v793, 0
        %1016 = vmatprep.subr.mxu0 0.0
        %1017 = vmatpush1.msra.mxu0 0.0
        %1018 = vmatprep.subr.mxu0 0.0
        %1019 = vmatpush1.msra.mxu0 0.0
        %1020 = vmatprep.subr.mxu0 0.0
        %1021 = vmatpush1.msra.mxu0 0.0
        %1022 = vmatprep.subr.mxu0 0.0
        %1023 = vmatpush1.msra.mxu0 0.0
        %1024 = vmatprep.subr.mxu0 0.0
        %1025 = vmatpush1.msra.mxu0 0.0
        %1026 = vmatprep.subr.mxu0 0.0
        %1027 = vmatpush1.msra.mxu0 0.0
        %1028 = vmatprep.subr.mxu0 0.0
        %1029 = vmatpush1.msra.mxu0 0.0
        %1030 = vmatprep.subr.mxu0 0.0
        %1031 = vmatpush1.msra.mxu0 0.0
        %1032 = vmatprep.subr.mxu0 0.0
        %1033 = vmatpush1.msra.mxu0 0.0
        %1034 = vmatprep.subr.mxu0 0.0
        %1035 = vmatpush1.msra.mxu0 0.0
        %1036 = vmatprep.subr.mxu0 0.0
        %1037 = vmatpush1.msra.mxu0 0.0
        %1038 = vmatprep.subr.mxu0 0.0
        %1039 = vmatpush1.msra.mxu0 0.0
        %1040 = vmatprep.subr.mxu0 0.0
        %1041 = vmatpush1.msra.mxu0 0.0
        %1042 = vmatprep.subr.mxu0 0.0
        %1043 = vmatpush1.msra.mxu0 0.0
        %1044 = vmatprep.subr.mxu0 0.0
        %1045 = vmatpush1.msra.mxu0 0.0
        %1046 = vmatprep.subr.mxu0 0.0
        %1047 = vmatpush1.msra.mxu0 %v440
        %1048 = vmatprep.subr.mxu0 0.0
        %1049 = vmatpush2.msra.mxu0 0.0
        %1050 = vmatprep.subr.mxu0 0.0
        %1051 = vmatpush2.msra.mxu0 0.0
        %1052 = vmatprep.subr.mxu0 0.0
        %1053 = vmatpush2.msra.mxu0 0.0
        %1054 = vmatprep.subr.mxu0 0.0
        %1055 = vmatpush2.msra.mxu0 0.0
        %1056 = vmatprep.subr.mxu0 0.0
        %1057 = vmatpush2.msra.mxu0 0.0
        %1058 = vmatprep.subr.mxu0 0.0
        %1059 = vmatpush2.msra.mxu0 0.0
        %1060 = vmatprep.subr.mxu0 0.0
        %1061 = vmatpush2.msra.mxu0 0.0
        %1062 = vmatprep.subr.mxu0 0.0
        %1063 = vmatpush2.msra.mxu0 0.0
        %1064 = vmatprep.subr.mxu0 0.0
        %1065 = vmatpush2.msra.mxu0 0.0
        %1066 = vmatprep.subr.mxu0 0.0
        %1067 = vmatpush2.msra.mxu0 0.0
        %1068 = vmatprep.subr.mxu0 0.0
        %1069 = vmatpush2.msra.mxu0 0.0
        %1070 = vmatprep.subr.mxu0 0.0
        %1071 = vmatpush2.msra.mxu0 0.0
        %1072 = vmatprep.subr.mxu0 0.0
        %1073 = vmatpush2.msra.mxu0 0.0
        %1074 = vmatprep.subr.mxu0 0.0
        %1075 = vmatpush2.msra.mxu0 0.0
        %1076 = vmatprep.subr.mxu0 0.0
        %1077 = vmatpush2.msra.mxu0 0.0
        %1078 = vmatprep.subr.mxu0 0.0
        %1079 = vmatpush2.msra.mxu0 0.0
        %1080 = vmatprep.mubr.f32.mxu0 0.0
        %1081 = vmatmul.mubr.f32.gmra.mxu0 %v1014
        %v1082 = vpop.f32.mrf.mxu0
        %v1083 = vadd.f32 0.0, %v1082
        %v1084 = vpop.f32.mrf.mxu0
        %1085 = vdwg.mxu0
        %1086 = vst.msk [vmem:[#allocation5] sm:$0xff] %vm441, %v864
        %1088 = vrot.lane.b32.xlu0 %v937, 8
        %v1089 = vpop.permute.xlu0 %1088
        %vm1091 = vcmask 130112
        %1092 = vst.msk [vmem:[#allocation5] sm:$0xff] %vm1091, %v1089
        %1094 = vrot.lane.b32.xlu0 %v1010, 16
        %v1095 = vpop.permute.xlu0 %1094
        %vm1097 = vcmask 195712
        %1098 = vst.msk [vmem:[#allocation5] sm:$0xff] %vm1097, %v1095
        %1100 = vrot.lane.b32.xlu0 %v1083, 24
        %v1101 = vpop.permute.xlu0 %1100
        %vm1103 = vcmask 261312
        %1104 = vst.msk [vmem:[#allocation5] sm:$0xff] %vm1103, %v1101
        %v1105 = vld [vmem:[#allocation5] sm:$0xff]
        %v1106 = vld [vmem:[#allocation11] sm:$0xff]
        %v1107 = vld [vmem:[#allocation11 + $0x8] sm:$0xff]
        %v1108 = vld [vmem:[#allocation11 + $0x10] sm:$0xff]
        %v1109 = vld [vmem:[#allocation11 + $0x18] sm:$0xff]
        %v1110 = vld [vmem:[%s4] sm:$0x1]
        %v1112 = vlaneseq
        %v1113 = vshrl.u32 %v1112, 7
        %v1114 = vsub.s32 0, %v1113
        %v1115 = vrot.slane %v1110, %v1114
        %vm1117 = vcmask 261120
        %v1119 = vsel %vm1117, %v1105, 0
        %1121 = vmatprep.subr.mxu0 0.0
        %1122 = vmatpush1.msra.mxu0 0.0
        %1123 = vmatprep.subr.mxu0 0.0
        %1124 = vmatpush1.msra.mxu0 0.0
        %1125 = vmatprep.subr.mxu0 0.0
        %1126 = vmatpush1.msra.mxu0 0.0
        %1127 = vmatprep.subr.mxu0 0.0
        %1128 = vmatpush1.msra.mxu0 0.0
        %1129 = vmatprep.subr.mxu0 0.0
        %1130 = vmatpush1.msra.mxu0 0.0
        %1131 = vmatprep.subr.mxu0 0.0
        %1132 = vmatpush1.msra.mxu0 0.0
        %1133 = vmatprep.subr.mxu0 0.0
        %1134 = vmatpush1.msra.mxu0 0.0
        %1135 = vmatprep.subr.mxu0 0.0
        %1136 = vmatpush1.msra.mxu0 0.0
        %1137 = vmatprep.subr.mxu0 0.0
        %1138 = vmatpush1.msra.mxu0 0.0
        %1139 = vmatprep.subr.mxu0 0.0
        %1140 = vmatpush1.msra.mxu0 0.0
        %1141 = vmatprep.subr.mxu0 0.0
        %1142 = vmatpush1.msra.mxu0 0.0
        %1143 = vmatprep.subr.mxu0 0.0
        %1144 = vmatpush1.msra.mxu0 0.0
        %1145 = vmatprep.subr.mxu0 0.0
        %1146 = vmatpush1.msra.mxu0 %v1109
        %1147 = vmatprep.subr.mxu0 0.0
        %1148 = vmatpush1.msra.mxu0 %v1108
        %1149 = vmatprep.subr.mxu0 0.0
        %1150 = vmatpush1.msra.mxu0 %v1107
        %1151 = vmatprep.subr.mxu0 0.0
        %1152 = vmatpush1.msra.mxu0 %v1106
        %1153 = vmatprep.subr.mxu0 0.0
        %1154 = vmatpush2.msra.mxu0 0.0
        %1155 = vmatprep.subr.mxu0 0.0
        %1156 = vmatpush2.msra.mxu0 0.0
        %1157 = vmatprep.subr.mxu0 0.0
        %1158 = vmatpush2.msra.mxu0 0.0
        %1159 = vmatprep.subr.mxu0 0.0
        %1160 = vmatpush2.msra.mxu0 0.0
        %1161 = vmatprep.subr.mxu0 0.0
        %1162 = vmatpush2.msra.mxu0 0.0
        %1163 = vmatprep.subr.mxu0 0.0
        %1164 = vmatpush2.msra.mxu0 0.0
        %1165 = vmatprep.subr.mxu0 0.0
        %1166 = vmatpush2.msra.mxu0 0.0
        %1167 = vmatprep.subr.mxu0 0.0
        %1168 = vmatpush2.msra.mxu0 0.0
        %1169 = vmatprep.subr.mxu0 0.0
        %1170 = vmatpush2.msra.mxu0 0.0
        %1171 = vmatprep.subr.mxu0 0.0
        %1172 = vmatpush2.msra.mxu0 0.0
        %1173 = vmatprep.subr.mxu0 0.0
        %1174 = vmatpush2.msra.mxu0 0.0
        %1175 = vmatprep.subr.mxu0 0.0
        %1176 = vmatpush2.msra.mxu0 0.0
        %1177 = vmatprep.subr.mxu0 0.0
        %1178 = vmatpush2.msra.mxu0 0.0
        %1179 = vmatprep.subr.mxu0 0.0
        %1180 = vmatpush2.msra.mxu0 0.0
        %1181 = vmatprep.subr.mxu0 0.0
        %1182 = vmatpush2.msra.mxu0 0.0
        %1183 = vmatprep.subr.mxu0 0.0
        %1184 = vmatpush2.msra.mxu0 0.0
        %1185 = vmatprep.mubr.f32.mxu0 0.0
        %1186 = vmatmul.mubr.f32.gmra.mxu0 %v1119
        %v1187 = vpop.f32.mrf.mxu0
        %v1188 = vadd.f32 %v1115, %v1187
        %v1189 = vpop.f32.mrf.mxu0
        %1190 = vdwg.mxu0
        %1191 = vst.msk [vmem:[%s282] sm:$0xff] %vm1117, %v1188
        %s1192 = sand.u32 %s155, 1
        %s1193 = scalar_lea.sflag [#allocation8], %s1192
        %s1194 = sand.u32 %s155, 1
        %s1195 = smul.addr %s1194, 8
        %s1196 = scalar_lea.vmem [#allocation12], %s1195
        // Predicated region
        $region57: #{tpu_custom_call.1} parent=39 // pred_check
          %p1197 = pneg %p165
        $region58: #{tpu_custom_call.1} parent=39 // pred_check_branch
          %1199 = sbr.rel (%p1197) target = $region60
        $region59: #{tpu_custom_call.1} parent=39 // pred_region
          %s1201 = ssub.s32 128, 128
          %1202 = vsyncadd %s1193, %s1201
          %s1203 = sadd.s32 %s28, %s27
          %s1204 = smul.addr %s1203, 128
          %s1205 = scalar_lea.hbm %s5, %s1204
          %s1207 = sshll.u32 %s1196, 4
          %s1208 = int_to_ptr.vmem [resolvable:$true] %s1207
          %1210 = dma.vmem_to_hbm [thread:$0]  %s1208, 128, %s1205, %s1193
        $region60: #{tpu_custom_call.1} parent=39 // pred_fallthru
          _
      $region40: #{tpu_custom_call.1} parent=5 // pred_fallthru
        _
      %p1211 = scmp.le.s32.totalorder 2, %s18
      // Predicated region
      $region61: #{tpu_custom_call.1} parent=5 // pred_check
        %p1212 = pneg %p1211
      $region62: #{tpu_custom_call.1} parent=5 // pred_check_branch
        %1214 = sbr.rel (%p1212) target = $region64
      $region63: #{tpu_custom_call.1} parent=5 // pred_region
        %s1215 = ssub.s32 %s18, 2
        // Predicated region
        $region65: #{tpu_custom_call.1} parent=63 // pred_check
          %p1216 = pneg %p171
        $region66: #{tpu_custom_call.1} parent=63 // pred_check_branch
          %1218 = sbr.rel (%p1216) target = $region68
        $region67: #{tpu_custom_call.1} parent=63 // pred_region
          %s1219 = sand.u32 %s156, 1
          %s1220 = scalar_lea.sflag [#allocation8], %s1219
          %s1221 = sand.u32 %s156, 1
          %s1222 = smul.addr %s1221, 8
          %s1223 = scalar_lea.vmem [#allocation12], %s1222
          %1224 = dma.done %s1220, 128
        $region68: #{tpu_custom_call.1} parent=63 // pred_fallthru
          _
      $region64: #{tpu_custom_call.1} parent=5 // pred_fallthru
        _
    $region6: #{tpu_custom_call.1} parent=1 // loop_footer
      %s22 = sadd.s32 1, %s18
    $region7: #{tpu_custom_call.1} parent=1 // loop_footer_branch
      %17 = sbr.rel target = $region3
    $region8: #{tpu_custom_call.1} parent=1 // loop_exit
      _
    %1225 = vsyncpa [#allocation7], 1
    %s1226 = scalar_lea.sflag [#allocation7], 1
    %1227 = vsyncpa %s1226, 1
    %1228 = vsyncpa [#allocation10], 1
    %1229 = vsyncpa [#allocation8], 1
    %s1230 = scalar_lea.sflag [#allocation8], 1
    %1231 = vsyncpa %s1230, 1

</llo_original>
